<compile_context>
chip_gen: v6e
topology: v6e:2x2x1
jax: 0.10.0
libtpu: 0.0.40
codegen_flags: <defaults>
</compile_context>

<pallas_src>
import functools

import numpy as np
import jax
import jax.numpy as jnp
from jax import lax
from jax.experimental import pallas as pl
from jax.experimental.pallas import tpu as pltpu

BN_EPS = 1e-5  # PyTorch BatchNorm2d default


def _fused_deconv_bn_relu_kernel(xs_ref, wt_ref, gamma_ref, beta_ref, o_ref,
                                 *, n_phase, cout, inv_count, eps):
    """Fused ConvTranspose2d + BatchNorm2d(batch stats) + ReLU.

    xs_ref:    (Ctap, R)  f32   shifted-input stack; row = (dy, dx, ci),
                                col = (n, h, w) flattened, lane-dense.
    wt_ref:    (PC, Ctap) f32   phase weights; row = (phase, co).
    gamma_ref: (Cout, 1)  f32
    beta_ref:  (Cout, 1)  f32
    o_ref:     (PC, R)    f32   phase-layout output, row = (phase, co).
    """
    pc, ctap = wt_ref.shape
    r = xs_ref.shape[1]

    # ---- transposed conv: 'ctap' VPU outer-product FMAs (exact f32).
    # The MXU is irrelevant for a 36-deep contraction; the VPU keeps full
    # f32 precision and frees the vex slot.
    y = jnp.zeros((pc, r), jnp.float32)
    for j in range(ctap):
        y = y + wt_ref[:, j:j + 1] * xs_ref[j:j + 1, :]

    # ---- BatchNorm2d training statistics (biased variance, like PyTorch).
    # Channel co lives in rows {g*cout + co : g in [0, n_phase)}.
    ch_sum = jnp.zeros((cout, 1), jnp.float32)
    for g in range(n_phase):
        blk = y[g * cout:(g + 1) * cout, :]
        ch_sum = ch_sum + jnp.sum(blk, axis=1, keepdims=True)
    mean = ch_sum * inv_count

    ch_ssq = jnp.zeros((cout, 1), jnp.float32)
    for g in range(n_phase):
        d = y[g * cout:(g + 1) * cout, :] - mean
        ch_ssq = ch_ssq + jnp.sum(d * d, axis=1, keepdims=True)
    var = ch_ssq * inv_count

    scale = gamma_ref[...] * lax.rsqrt(var + eps)        # (Cout, 1)
    shift = beta_ref[...] - mean * scale                 # (Cout, 1)

    # ---- normalize + ReLU; dense 8-row slabs, 512-lane unmasked stores.
    for g in range(n_phase):
        blk = y[g * cout:(g + 1) * cout, :]
        o_ref[g * cout:(g + 1) * cout, :] = jnp.maximum(blk * scale + shift, 0.0)


def deconv2d_block(x, weight, gamma, beta, *, stride, padding):
    """Forward pass of Deconv2dBlock(normalize=True, activation=ReLU).

    x:      (N, Cin, H, W)  f32
    weight: (Cin, Cout, K, K)   nn.ConvTranspose2d weight layout (bias=False,
                                since normalize=True)
    gamma, beta: (Cout,)        BatchNorm2d affine parameters
    Returns (N, Cout, Ho, Wo), Ho = (H-1)*stride - 2*padding + K.
    """
    N, Cin, H, W = x.shape
    _, Cout, K, _ = weight.shape
    s, p = int(stride), int(padding)
    Ho = (H - 1) * s - 2 * p + K
    Wo = (W - 1) * s - 2 * p + K

    # Phase decomposition below assumes the "clean upsampling" geometry
    # (output = stride * input), i.e. K - 2p == s, which holds for the usual
    # DCGAN-style deconv block (K=4, s=2, p=1) this module is used with.
    # TODO(synk): general (K - 2p != s) geometries need ragged phase planes.
    if K - 2 * p != s:
        raise NotImplementedError(
            "phase-fused kernel requires K - 2*padding == stride")
    assert Ho == H * s and Wo == W * s

    # Row shifts dy such that kh = -dy*s + ph + p lands in [0, K) for some
    # output phase ph; same set is used for columns.
    dys = [dy for dy in range(-K, K + 1)
           if any(0 <= -dy * s + ph + p < K for ph in range(s))]
    d_lo, d_hi = -min(dys), max(dys)
    n_sh = len(dys)

    # ---- shifted-input stack Xs[(dyi, dxi, ci), (n, h, w)] (tiny XLA prep).
    xp = jnp.pad(x, ((0, 0), (0, 0), (d_lo, d_hi), (d_lo, d_hi)))
    shifts = []
    for dy in dys:
        for dx in dys:
            shifts.append(xp[:, :, d_lo + dy:d_lo + dy + H,
                             d_lo + dx:d_lo + dx + W])        # (N, Cin, H, W)
    xs = jnp.stack(shifts, axis=0)                            # (n_sh^2, N, Cin, H, W)
    xs = jnp.transpose(xs, (0, 2, 1, 3, 4)).reshape(n_sh * n_sh * Cin, N * H * W)
    xs = xs.astype(jnp.float32)

    # ---- phase weight matrix:
    #   WT[(ph*s+pw)*Cout + co, (dyi*n_sh+dxi)*Cin + ci] = W[ci, co, kh, kw]
    #   with kh = -dy*s + ph + p, kw = -dx*s + pw + p (zero if out of range).
    # The col2im overlap-add is folded in here -> nothing is scattered later.
    w_f32 = weight.astype(jnp.float32)
    zeros_blk = jnp.zeros((Cout, Cin), jnp.float32)
    phase_rows = []
    for ph in range(s):
        for pw in range(s):
            row_blocks = []
            for dy in dys:
                for dx in dys:
                    kh = -dy * s + ph + p
                    kw = -dx * s + pw + p
                    if 0 <= kh < K and 0 <= kw < K:
                        row_blocks.append(w_f32[:, :, kh, kw].T)  # (Cout, Cin)
                    else:
                        row_blocks.append(zeros_blk)
            phase_rows.append(jnp.concatenate(row_blocks, axis=1))
    wt = jnp.concatenate(phase_rows, axis=0)          # (s^2*Cout, n_sh^2*Cin)

    PC, Ctap = s * s * Cout, n_sh * n_sh * Cin
    R = N * H * W
    inv_count = 1.0 / float(N * Ho * Wo)

    kernel = functools.partial(_fused_deconv_bn_relu_kernel,
                               n_phase=s * s, cout=Cout,
                               inv_count=inv_count, eps=BN_EPS)

    # TODO(synk): BatchNorm running_mean/running_var momentum updates (a
    #             training-time side effect of nn.BatchNorm2d) are not
    #             produced; they do not affect this forward output.
    out2d = pl.pallas_call(
        kernel,
        out_shape=jax.ShapeDtypeStruct((PC, R), jnp.float32),
        grid=(1,),
        in_specs=[pl.BlockSpec((Ctap, R), lambda i: (0, 0)),
                  pl.BlockSpec((PC, Ctap), lambda i: (0, 0)),
                  pl.BlockSpec((Cout, 1), lambda i: (0, 0)),
                  pl.BlockSpec((Cout, 1), lambda i: (0, 0))],
        out_specs=pl.BlockSpec((PC, R), lambda i: (0, 0)),
        compiler_params=pltpu.CompilerParams(
            dimension_semantics=("arbitrary",),
            vmem_limit_bytes=32 << 20),     # well under v7x's 64 MiB physical VMEM
        cost_estimate=pl.CostEstimate(
            flops=2 * PC * Ctap * R + 8 * PC * R,
            transcendentals=Cout,
            bytes_accessed=4 * (Ctap * R + PC * Ctap + 2 * PC * R)),
    )(xs, wt,
      gamma.astype(jnp.float32).reshape(Cout, 1),
      beta.astype(jnp.float32).reshape(Cout, 1))

    # ---- single XLA transpose: phase layout -> NCHW (64 KB layout plumbing).
    out = out2d.reshape(s, s, Cout, N, H, W)          # (ph, pw, co, n, q, r)
    out = jnp.transpose(out, (3, 2, 4, 0, 5, 1))      # (n, co, q, ph, r, pw)
    return out.reshape(N, Cout, Ho, Wo)


if __name__ == "__main__":
    # Deconv2dBlock(in_channels=4, out_channels=8, kernel_size=4, stride=2,
    #               padding=1, normalize=True, activation_func=ReLU)
    N, Cin, H, W = 2, 4, 16, 16
    Cout, K, stride, padding = 8, 4, 2, 1

    key = jax.random.PRNGKey(0)
    kx, kw, kg, kb = jax.random.split(key, 4)
    x = jax.random.normal(kx, (N, Cin, H, W), jnp.float32)
    weight = 0.1 * jax.random.normal(kw, (Cin, Cout, K, K), jnp.float32)
    gamma = 1.0 + 0.1 * jax.random.normal(kg, (Cout,), jnp.float32)
    beta = 0.1 * jax.random.normal(kb, (Cout,), jnp.float32)

    fwd = jax.jit(functools.partial(deconv2d_block, stride=stride,
                                    padding=padding))
    out = jax.block_until_ready(fwd(x, weight, gamma, beta))
    assert out.shape == (N, Cout, 32, 32), out.shape

    # Pure-JAX f32 reference: ConvTranspose2d == lhs-dilated conv with the
    # spatially flipped kernel, then train-mode BatchNorm2d, then ReLU.
    w_ref = jnp.transpose(weight[:, :, ::-1, ::-1], (1, 0, 2, 3))  # (Cout,Cin,K,K)
    y_ref = lax.conv_general_dilated(
        x, w_ref, window_strides=(1, 1),
        padding=[(K - 1 - padding, K - 1 - padding)] * 2,
        lhs_dilation=(stride, stride),
        dimension_numbers=("NCHW", "OIHW", "NCHW"),
        precision=lax.Precision.HIGHEST)
    mean = jnp.mean(y_ref, axis=(0, 2, 3), keepdims=True)
    var = jnp.mean((y_ref - mean) ** 2, axis=(0, 2, 3), keepdims=True)
    y_ref = (y_ref - mean) * lax.rsqrt(var + BN_EPS) \
        * gamma.reshape(1, -1, 1, 1) + beta.reshape(1, -1, 1, 1)
    y_ref = jnp.maximum(y_ref, 0.0)

    np.testing.assert_allclose(np.asarray(out), np.asarray(y_ref),
                               atol=5e-4, rtol=5e-4)
    print("KERNEL_OK")
</pallas_src>

<mosaic_0001>
module attributes {stable_mosaic.version = 11 : i64} {
  func.func @_fused_deconv_bn_relu_kernel(%arg0: i32, %arg1: memref<36x512xf32, #tpu.memory_space<vmem>>, %arg2: memref<32x36xf32, #tpu.memory_space<vmem>>, %arg3: memref<8x1xf32, #tpu.memory_space<vmem>>, %arg4: memref<8x1xf32, #tpu.memory_space<vmem>>, %arg5: memref<32x512xf32, #tpu.memory_space<vmem>>) attributes {dimension_semantics = [#tpu.dimension_semantics<arbitrary>], iteration_bounds = array<i64: 1>, scalar_prefetch = 0 : i64, scratch_operands = 0 : i64, tpu.core_type = #tpu.core_type<tc>, window_params = [{pipeline_mode = #tpu.pipeline_mode<synchronous>, transform_indices = @transform_0, window_bounds = array<i64: 36, 512>}, {pipeline_mode = #tpu.pipeline_mode<synchronous>, transform_indices = @transform_1, window_bounds = array<i64: 32, 36>}, {pipeline_mode = #tpu.pipeline_mode<synchronous>, transform_indices = @transform_2, window_bounds = array<i64: 8, 1>}, {pipeline_mode = #tpu.pipeline_mode<synchronous>, transform_indices = @transform_3, window_bounds = array<i64: 8, 1>}, {pipeline_mode = #tpu.pipeline_mode<synchronous>, transform_indices = @transform_4, window_bounds = array<i64: 32, 512>}]} {
    %cst = arith.constant 0.000000e+00 : f32
    %0 = vector.broadcast %cst : f32 to vector<32x512xf32>
    %c0 = arith.constant 0 : index
    %c0_0 = arith.constant 0 : index
    %1 = vector.load %arg2[%c0, %c0_0] : memref<32x36xf32, #tpu.memory_space<vmem>>, vector<32x1xf32>
    %c0_1 = arith.constant 0 : index
    %c0_2 = arith.constant 0 : index
    %2 = vector.load %arg1[%c0_1, %c0_2] : memref<36x512xf32, #tpu.memory_space<vmem>>, vector<1x512xf32>
    %3 = vector.broadcast %1 : vector<32x1xf32> to vector<32x512xf32>
    %4 = vector.broadcast %2 : vector<1x512xf32> to vector<32x512xf32>
    %5 = arith.mulf %3, %4 : vector<32x512xf32>
    %6 = arith.addf %0, %5 : vector<32x512xf32>
    %c0_3 = arith.constant 0 : index
    %c1 = arith.constant 1 : index
    %7 = vector.load %arg2[%c0_3, %c1] : memref<32x36xf32, #tpu.memory_space<vmem>>, vector<32x1xf32>
    %c1_4 = arith.constant 1 : index
    %c0_5 = arith.constant 0 : index
    %8 = vector.load %arg1[%c1_4, %c0_5] : memref<36x512xf32, #tpu.memory_space<vmem>>, vector<1x512xf32>
    %9 = vector.broadcast %7 : vector<32x1xf32> to vector<32x512xf32>
    %10 = vector.broadcast %8 : vector<1x512xf32> to vector<32x512xf32>
    %11 = arith.mulf %9, %10 : vector<32x512xf32>
    %12 = arith.addf %6, %11 : vector<32x512xf32>
    %c0_6 = arith.constant 0 : index
    %c2 = arith.constant 2 : index
    %13 = vector.load %arg2[%c0_6, %c2] : memref<32x36xf32, #tpu.memory_space<vmem>>, vector<32x1xf32>
    %c2_7 = arith.constant 2 : index
    %c0_8 = arith.constant 0 : index
    %14 = vector.load %arg1[%c2_7, %c0_8] : memref<36x512xf32, #tpu.memory_space<vmem>>, vector<1x512xf32>
    %15 = vector.broadcast %13 : vector<32x1xf32> to vector<32x512xf32>
    %16 = vector.broadcast %14 : vector<1x512xf32> to vector<32x512xf32>
    %17 = arith.mulf %15, %16 : vector<32x512xf32>
    %18 = arith.addf %12, %17 : vector<32x512xf32>
    %c0_9 = arith.constant 0 : index
    %c3 = arith.constant 3 : index
    %19 = vector.load %arg2[%c0_9, %c3] : memref<32x36xf32, #tpu.memory_space<vmem>>, vector<32x1xf32>
    %c3_10 = arith.constant 3 : index
    %c0_11 = arith.constant 0 : index
    %20 = vector.load %arg1[%c3_10, %c0_11] : memref<36x512xf32, #tpu.memory_space<vmem>>, vector<1x512xf32>
    %21 = vector.broadcast %19 : vector<32x1xf32> to vector<32x512xf32>
    %22 = vector.broadcast %20 : vector<1x512xf32> to vector<32x512xf32>
    %23 = arith.mulf %21, %22 : vector<32x512xf32>
    %24 = arith.addf %18, %23 : vector<32x512xf32>
    %c0_12 = arith.constant 0 : index
    %c4 = arith.constant 4 : index
    %25 = vector.load %arg2[%c0_12, %c4] : memref<32x36xf32, #tpu.memory_space<vmem>>, vector<32x1xf32>
    %c4_13 = arith.constant 4 : index
    %c0_14 = arith.constant 0 : index
    %26 = vector.load %arg1[%c4_13, %c0_14] : memref<36x512xf32, #tpu.memory_space<vmem>>, vector<1x512xf32>
    %27 = vector.broadcast %25 : vector<32x1xf32> to vector<32x512xf32>
    %28 = vector.broadcast %26 : vector<1x512xf32> to vector<32x512xf32>
    %29 = arith.mulf %27, %28 : vector<32x512xf32>
    %30 = arith.addf %24, %29 : vector<32x512xf32>
    %c0_15 = arith.constant 0 : index
    %c5 = arith.constant 5 : index
    %31 = vector.load %arg2[%c0_15, %c5] : memref<32x36xf32, #tpu.memory_space<vmem>>, vector<32x1xf32>
    %c5_16 = arith.constant 5 : index
    %c0_17 = arith.constant 0 : index
    %32 = vector.load %arg1[%c5_16, %c0_17] : memref<36x512xf32, #tpu.memory_space<vmem>>, vector<1x512xf32>
    %33 = vector.broadcast %31 : vector<32x1xf32> to vector<32x512xf32>
    %34 = vector.broadcast %32 : vector<1x512xf32> to vector<32x512xf32>
    %35 = arith.mulf %33, %34 : vector<32x512xf32>
    %36 = arith.addf %30, %35 : vector<32x512xf32>
    %c0_18 = arith.constant 0 : index
    %c6 = arith.constant 6 : index
    %37 = vector.load %arg2[%c0_18, %c6] : memref<32x36xf32, #tpu.memory_space<vmem>>, vector<32x1xf32>
    %c6_19 = arith.constant 6 : index
    %c0_20 = arith.constant 0 : index
    %38 = vector.load %arg1[%c6_19, %c0_20] : memref<36x512xf32, #tpu.memory_space<vmem>>, vector<1x512xf32>
    %39 = vector.broadcast %37 : vector<32x1xf32> to vector<32x512xf32>
    %40 = vector.broadcast %38 : vector<1x512xf32> to vector<32x512xf32>
    %41 = arith.mulf %39, %40 : vector<32x512xf32>
    %42 = arith.addf %36, %41 : vector<32x512xf32>
    %c0_21 = arith.constant 0 : index
    %c7 = arith.constant 7 : index
    %43 = vector.load %arg2[%c0_21, %c7] : memref<32x36xf32, #tpu.memory_space<vmem>>, vector<32x1xf32>
    %c7_22 = arith.constant 7 : index
    %c0_23 = arith.constant 0 : index
    %44 = vector.load %arg1[%c7_22, %c0_23] : memref<36x512xf32, #tpu.memory_space<vmem>>, vector<1x512xf32>
    %45 = vector.broadcast %43 : vector<32x1xf32> to vector<32x512xf32>
    %46 = vector.broadcast %44 : vector<1x512xf32> to vector<32x512xf32>
    %47 = arith.mulf %45, %46 : vector<32x512xf32>
    %48 = arith.addf %42, %47 : vector<32x512xf32>
    %c0_24 = arith.constant 0 : index
    %c8 = arith.constant 8 : index
    %49 = vector.load %arg2[%c0_24, %c8] : memref<32x36xf32, #tpu.memory_space<vmem>>, vector<32x1xf32>
    %c8_25 = arith.constant 8 : index
    %c0_26 = arith.constant 0 : index
    %50 = vector.load %arg1[%c8_25, %c0_26] : memref<36x512xf32, #tpu.memory_space<vmem>>, vector<1x512xf32>
    %51 = vector.broadcast %49 : vector<32x1xf32> to vector<32x512xf32>
    %52 = vector.broadcast %50 : vector<1x512xf32> to vector<32x512xf32>
    %53 = arith.mulf %51, %52 : vector<32x512xf32>
    %54 = arith.addf %48, %53 : vector<32x512xf32>
    %c0_27 = arith.constant 0 : index
    %c9 = arith.constant 9 : index
    %55 = vector.load %arg2[%c0_27, %c9] : memref<32x36xf32, #tpu.memory_space<vmem>>, vector<32x1xf32>
    %c9_28 = arith.constant 9 : index
    %c0_29 = arith.constant 0 : index
    %56 = vector.load %arg1[%c9_28, %c0_29] : memref<36x512xf32, #tpu.memory_space<vmem>>, vector<1x512xf32>
    %57 = vector.broadcast %55 : vector<32x1xf32> to vector<32x512xf32>
    %58 = vector.broadcast %56 : vector<1x512xf32> to vector<32x512xf32>
    %59 = arith.mulf %57, %58 : vector<32x512xf32>
    %60 = arith.addf %54, %59 : vector<32x512xf32>
    %c0_30 = arith.constant 0 : index
    %c10 = arith.constant 10 : index
    %61 = vector.load %arg2[%c0_30, %c10] : memref<32x36xf32, #tpu.memory_space<vmem>>, vector<32x1xf32>
    %c10_31 = arith.constant 10 : index
    %c0_32 = arith.constant 0 : index
    %62 = vector.load %arg1[%c10_31, %c0_32] : memref<36x512xf32, #tpu.memory_space<vmem>>, vector<1x512xf32>
    %63 = vector.broadcast %61 : vector<32x1xf32> to vector<32x512xf32>
    %64 = vector.broadcast %62 : vector<1x512xf32> to vector<32x512xf32>
    %65 = arith.mulf %63, %64 : vector<32x512xf32>
    %66 = arith.addf %60, %65 : vector<32x512xf32>
    %c0_33 = arith.constant 0 : index
    %c11 = arith.constant 11 : index
    %67 = vector.load %arg2[%c0_33, %c11] : memref<32x36xf32, #tpu.memory_space<vmem>>, vector<32x1xf32>
    %c11_34 = arith.constant 11 : index
    %c0_35 = arith.constant 0 : index
    %68 = vector.load %arg1[%c11_34, %c0_35] : memref<36x512xf32, #tpu.memory_space<vmem>>, vector<1x512xf32>
    %69 = vector.broadcast %67 : vector<32x1xf32> to vector<32x512xf32>
    %70 = vector.broadcast %68 : vector<1x512xf32> to vector<32x512xf32>
    %71 = arith.mulf %69, %70 : vector<32x512xf32>
    %72 = arith.addf %66, %71 : vector<32x512xf32>
    %c0_36 = arith.constant 0 : index
    %c12 = arith.constant 12 : index
    %73 = vector.load %arg2[%c0_36, %c12] : memref<32x36xf32, #tpu.memory_space<vmem>>, vector<32x1xf32>
    %c12_37 = arith.constant 12 : index
    %c0_38 = arith.constant 0 : index
    %74 = vector.load %arg1[%c12_37, %c0_38] : memref<36x512xf32, #tpu.memory_space<vmem>>, vector<1x512xf32>
    %75 = vector.broadcast %73 : vector<32x1xf32> to vector<32x512xf32>
    %76 = vector.broadcast %74 : vector<1x512xf32> to vector<32x512xf32>
    %77 = arith.mulf %75, %76 : vector<32x512xf32>
    %78 = arith.addf %72, %77 : vector<32x512xf32>
    %c0_39 = arith.constant 0 : index
    %c13 = arith.constant 13 : index
    %79 = vector.load %arg2[%c0_39, %c13] : memref<32x36xf32, #tpu.memory_space<vmem>>, vector<32x1xf32>
    %c13_40 = arith.constant 13 : index
    %c0_41 = arith.constant 0 : index
    %80 = vector.load %arg1[%c13_40, %c0_41] : memref<36x512xf32, #tpu.memory_space<vmem>>, vector<1x512xf32>
    %81 = vector.broadcast %79 : vector<32x1xf32> to vector<32x512xf32>
    %82 = vector.broadcast %80 : vector<1x512xf32> to vector<32x512xf32>
    %83 = arith.mulf %81, %82 : vector<32x512xf32>
    %84 = arith.addf %78, %83 : vector<32x512xf32>
    %c0_42 = arith.constant 0 : index
    %c14 = arith.constant 14 : index
    %85 = vector.load %arg2[%c0_42, %c14] : memref<32x36xf32, #tpu.memory_space<vmem>>, vector<32x1xf32>
    %c14_43 = arith.constant 14 : index
    %c0_44 = arith.constant 0 : index
    %86 = vector.load %arg1[%c14_43, %c0_44] : memref<36x512xf32, #tpu.memory_space<vmem>>, vector<1x512xf32>
    %87 = vector.broadcast %85 : vector<32x1xf32> to vector<32x512xf32>
    %88 = vector.broadcast %86 : vector<1x512xf32> to vector<32x512xf32>
    %89 = arith.mulf %87, %88 : vector<32x512xf32>
    %90 = arith.addf %84, %89 : vector<32x512xf32>
    %c0_45 = arith.constant 0 : index
    %c15 = arith.constant 15 : index
    %91 = vector.load %arg2[%c0_45, %c15] : memref<32x36xf32, #tpu.memory_space<vmem>>, vector<32x1xf32>
    %c15_46 = arith.constant 15 : index
    %c0_47 = arith.constant 0 : index
    %92 = vector.load %arg1[%c15_46, %c0_47] : memref<36x512xf32, #tpu.memory_space<vmem>>, vector<1x512xf32>
    %93 = vector.broadcast %91 : vector<32x1xf32> to vector<32x512xf32>
    %94 = vector.broadcast %92 : vector<1x512xf32> to vector<32x512xf32>
    %95 = arith.mulf %93, %94 : vector<32x512xf32>
    %96 = arith.addf %90, %95 : vector<32x512xf32>
    %c0_48 = arith.constant 0 : index
    %c16 = arith.constant 16 : index
    %97 = vector.load %arg2[%c0_48, %c16] : memref<32x36xf32, #tpu.memory_space<vmem>>, vector<32x1xf32>
    %c16_49 = arith.constant 16 : index
    %c0_50 = arith.constant 0 : index
    %98 = vector.load %arg1[%c16_49, %c0_50] : memref<36x512xf32, #tpu.memory_space<vmem>>, vector<1x512xf32>
    %99 = vector.broadcast %97 : vector<32x1xf32> to vector<32x512xf32>
    %100 = vector.broadcast %98 : vector<1x512xf32> to vector<32x512xf32>
    %101 = arith.mulf %99, %100 : vector<32x512xf32>
    %102 = arith.addf %96, %101 : vector<32x512xf32>
    %c0_51 = arith.constant 0 : index
    %c17 = arith.constant 17 : index
    %103 = vector.load %arg2[%c0_51, %c17] : memref<32x36xf32, #tpu.memory_space<vmem>>, vector<32x1xf32>
    %c17_52 = arith.constant 17 : index
    %c0_53 = arith.constant 0 : index
    %104 = vector.load %arg1[%c17_52, %c0_53] : memref<36x512xf32, #tpu.memory_space<vmem>>, vector<1x512xf32>
    %105 = vector.broadcast %103 : vector<32x1xf32> to vector<32x512xf32>
    %106 = vector.broadcast %104 : vector<1x512xf32> to vector<32x512xf32>
    %107 = arith.mulf %105, %106 : vector<32x512xf32>
    %108 = arith.addf %102, %107 : vector<32x512xf32>
    %c0_54 = arith.constant 0 : index
    %c18 = arith.constant 18 : index
    %109 = vector.load %arg2[%c0_54, %c18] : memref<32x36xf32, #tpu.memory_space<vmem>>, vector<32x1xf32>
    %c18_55 = arith.constant 18 : index
    %c0_56 = arith.constant 0 : index
    %110 = vector.load %arg1[%c18_55, %c0_56] : memref<36x512xf32, #tpu.memory_space<vmem>>, vector<1x512xf32>
    %111 = vector.broadcast %109 : vector<32x1xf32> to vector<32x512xf32>
    %112 = vector.broadcast %110 : vector<1x512xf32> to vector<32x512xf32>
    %113 = arith.mulf %111, %112 : vector<32x512xf32>
    %114 = arith.addf %108, %113 : vector<32x512xf32>
    %c0_57 = arith.constant 0 : index
    %c19 = arith.constant 19 : index
    %115 = vector.load %arg2[%c0_57, %c19] : memref<32x36xf32, #tpu.memory_space<vmem>>, vector<32x1xf32>
    %c19_58 = arith.constant 19 : index
    %c0_59 = arith.constant 0 : index
    %116 = vector.load %arg1[%c19_58, %c0_59] : memref<36x512xf32, #tpu.memory_space<vmem>>, vector<1x512xf32>
    %117 = vector.broadcast %115 : vector<32x1xf32> to vector<32x512xf32>
    %118 = vector.broadcast %116 : vector<1x512xf32> to vector<32x512xf32>
    %119 = arith.mulf %117, %118 : vector<32x512xf32>
    %120 = arith.addf %114, %119 : vector<32x512xf32>
    %c0_60 = arith.constant 0 : index
    %c20 = arith.constant 20 : index
    %121 = vector.load %arg2[%c0_60, %c20] : memref<32x36xf32, #tpu.memory_space<vmem>>, vector<32x1xf32>
    %c20_61 = arith.constant 20 : index
    %c0_62 = arith.constant 0 : index
    %122 = vector.load %arg1[%c20_61, %c0_62] : memref<36x512xf32, #tpu.memory_space<vmem>>, vector<1x512xf32>
    %123 = vector.broadcast %121 : vector<32x1xf32> to vector<32x512xf32>
    %124 = vector.broadcast %122 : vector<1x512xf32> to vector<32x512xf32>
    %125 = arith.mulf %123, %124 : vector<32x512xf32>
    %126 = arith.addf %120, %125 : vector<32x512xf32>
    %c0_63 = arith.constant 0 : index
    %c21 = arith.constant 21 : index
    %127 = vector.load %arg2[%c0_63, %c21] : memref<32x36xf32, #tpu.memory_space<vmem>>, vector<32x1xf32>
    %c21_64 = arith.constant 21 : index
    %c0_65 = arith.constant 0 : index
    %128 = vector.load %arg1[%c21_64, %c0_65] : memref<36x512xf32, #tpu.memory_space<vmem>>, vector<1x512xf32>
    %129 = vector.broadcast %127 : vector<32x1xf32> to vector<32x512xf32>
    %130 = vector.broadcast %128 : vector<1x512xf32> to vector<32x512xf32>
    %131 = arith.mulf %129, %130 : vector<32x512xf32>
    %132 = arith.addf %126, %131 : vector<32x512xf32>
    %c0_66 = arith.constant 0 : index
    %c22 = arith.constant 22 : index
    %133 = vector.load %arg2[%c0_66, %c22] : memref<32x36xf32, #tpu.memory_space<vmem>>, vector<32x1xf32>
    %c22_67 = arith.constant 22 : index
    %c0_68 = arith.constant 0 : index
    %134 = vector.load %arg1[%c22_67, %c0_68] : memref<36x512xf32, #tpu.memory_space<vmem>>, vector<1x512xf32>
    %135 = vector.broadcast %133 : vector<32x1xf32> to vector<32x512xf32>
    %136 = vector.broadcast %134 : vector<1x512xf32> to vector<32x512xf32>
    %137 = arith.mulf %135, %136 : vector<32x512xf32>
    %138 = arith.addf %132, %137 : vector<32x512xf32>
    %c0_69 = arith.constant 0 : index
    %c23 = arith.constant 23 : index
    %139 = vector.load %arg2[%c0_69, %c23] : memref<32x36xf32, #tpu.memory_space<vmem>>, vector<32x1xf32>
    %c23_70 = arith.constant 23 : index
    %c0_71 = arith.constant 0 : index
    %140 = vector.load %arg1[%c23_70, %c0_71] : memref<36x512xf32, #tpu.memory_space<vmem>>, vector<1x512xf32>
    %141 = vector.broadcast %139 : vector<32x1xf32> to vector<32x512xf32>
    %142 = vector.broadcast %140 : vector<1x512xf32> to vector<32x512xf32>
    %143 = arith.mulf %141, %142 : vector<32x512xf32>
    %144 = arith.addf %138, %143 : vector<32x512xf32>
    %c0_72 = arith.constant 0 : index
    %c24 = arith.constant 24 : index
    %145 = vector.load %arg2[%c0_72, %c24] : memref<32x36xf32, #tpu.memory_space<vmem>>, vector<32x1xf32>
    %c24_73 = arith.constant 24 : index
    %c0_74 = arith.constant 0 : index
    %146 = vector.load %arg1[%c24_73, %c0_74] : memref<36x512xf32, #tpu.memory_space<vmem>>, vector<1x512xf32>
    %147 = vector.broadcast %145 : vector<32x1xf32> to vector<32x512xf32>
    %148 = vector.broadcast %146 : vector<1x512xf32> to vector<32x512xf32>
    %149 = arith.mulf %147, %148 : vector<32x512xf32>
    %150 = arith.addf %144, %149 : vector<32x512xf32>
    %c0_75 = arith.constant 0 : index
    %c25 = arith.constant 25 : index
    %151 = vector.load %arg2[%c0_75, %c25] : memref<32x36xf32, #tpu.memory_space<vmem>>, vector<32x1xf32>
    %c25_76 = arith.constant 25 : index
    %c0_77 = arith.constant 0 : index
    %152 = vector.load %arg1[%c25_76, %c0_77] : memref<36x512xf32, #tpu.memory_space<vmem>>, vector<1x512xf32>
    %153 = vector.broadcast %151 : vector<32x1xf32> to vector<32x512xf32>
    %154 = vector.broadcast %152 : vector<1x512xf32> to vector<32x512xf32>
    %155 = arith.mulf %153, %154 : vector<32x512xf32>
    %156 = arith.addf %150, %155 : vector<32x512xf32>
    %c0_78 = arith.constant 0 : index
    %c26 = arith.constant 26 : index
    %157 = vector.load %arg2[%c0_78, %c26] : memref<32x36xf32, #tpu.memory_space<vmem>>, vector<32x1xf32>
    %c26_79 = arith.constant 26 : index
    %c0_80 = arith.constant 0 : index
    %158 = vector.load %arg1[%c26_79, %c0_80] : memref<36x512xf32, #tpu.memory_space<vmem>>, vector<1x512xf32>
    %159 = vector.broadcast %157 : vector<32x1xf32> to vector<32x512xf32>
    %160 = vector.broadcast %158 : vector<1x512xf32> to vector<32x512xf32>
    %161 = arith.mulf %159, %160 : vector<32x512xf32>
    %162 = arith.addf %156, %161 : vector<32x512xf32>
    %c0_81 = arith.constant 0 : index
    %c27 = arith.constant 27 : index
    %163 = vector.load %arg2[%c0_81, %c27] : memref<32x36xf32, #tpu.memory_space<vmem>>, vector<32x1xf32>
    %c27_82 = arith.constant 27 : index
    %c0_83 = arith.constant 0 : index
    %164 = vector.load %arg1[%c27_82, %c0_83] : memref<36x512xf32, #tpu.memory_space<vmem>>, vector<1x512xf32>
    %165 = vector.broadcast %163 : vector<32x1xf32> to vector<32x512xf32>
    %166 = vector.broadcast %164 : vector<1x512xf32> to vector<32x512xf32>
    %167 = arith.mulf %165, %166 : vector<32x512xf32>
    %168 = arith.addf %162, %167 : vector<32x512xf32>
    %c0_84 = arith.constant 0 : index
    %c28 = arith.constant 28 : index
    %169 = vector.load %arg2[%c0_84, %c28] : memref<32x36xf32, #tpu.memory_space<vmem>>, vector<32x1xf32>
    %c28_85 = arith.constant 28 : index
    %c0_86 = arith.constant 0 : index
    %170 = vector.load %arg1[%c28_85, %c0_86] : memref<36x512xf32, #tpu.memory_space<vmem>>, vector<1x512xf32>
    %171 = vector.broadcast %169 : vector<32x1xf32> to vector<32x512xf32>
    %172 = vector.broadcast %170 : vector<1x512xf32> to vector<32x512xf32>
    %173 = arith.mulf %171, %172 : vector<32x512xf32>
    %174 = arith.addf %168, %173 : vector<32x512xf32>
    %c0_87 = arith.constant 0 : index
    %c29 = arith.constant 29 : index
    %175 = vector.load %arg2[%c0_87, %c29] : memref<32x36xf32, #tpu.memory_space<vmem>>, vector<32x1xf32>
    %c29_88 = arith.constant 29 : index
    %c0_89 = arith.constant 0 : index
    %176 = vector.load %arg1[%c29_88, %c0_89] : memref<36x512xf32, #tpu.memory_space<vmem>>, vector<1x512xf32>
    %177 = vector.broadcast %175 : vector<32x1xf32> to vector<32x512xf32>
    %178 = vector.broadcast %176 : vector<1x512xf32> to vector<32x512xf32>
    %179 = arith.mulf %177, %178 : vector<32x512xf32>
    %180 = arith.addf %174, %179 : vector<32x512xf32>
    %c0_90 = arith.constant 0 : index
    %c30 = arith.constant 30 : index
    %181 = vector.load %arg2[%c0_90, %c30] : memref<32x36xf32, #tpu.memory_space<vmem>>, vector<32x1xf32>
    %c30_91 = arith.constant 30 : index
    %c0_92 = arith.constant 0 : index
    %182 = vector.load %arg1[%c30_91, %c0_92] : memref<36x512xf32, #tpu.memory_space<vmem>>, vector<1x512xf32>
    %183 = vector.broadcast %181 : vector<32x1xf32> to vector<32x512xf32>
    %184 = vector.broadcast %182 : vector<1x512xf32> to vector<32x512xf32>
    %185 = arith.mulf %183, %184 : vector<32x512xf32>
    %186 = arith.addf %180, %185 : vector<32x512xf32>
    %c0_93 = arith.constant 0 : index
    %c31 = arith.constant 31 : index
    %187 = vector.load %arg2[%c0_93, %c31] : memref<32x36xf32, #tpu.memory_space<vmem>>, vector<32x1xf32>
    %c31_94 = arith.constant 31 : index
    %c0_95 = arith.constant 0 : index
    %188 = vector.load %arg1[%c31_94, %c0_95] : memref<36x512xf32, #tpu.memory_space<vmem>>, vector<1x512xf32>
    %189 = vector.broadcast %187 : vector<32x1xf32> to vector<32x512xf32>
    %190 = vector.broadcast %188 : vector<1x512xf32> to vector<32x512xf32>
    %191 = arith.mulf %189, %190 : vector<32x512xf32>
    %192 = arith.addf %186, %191 : vector<32x512xf32>
    %c0_96 = arith.constant 0 : index
    %c32 = arith.constant 32 : index
    %193 = vector.load %arg2[%c0_96, %c32] : memref<32x36xf32, #tpu.memory_space<vmem>>, vector<32x1xf32>
    %c32_97 = arith.constant 32 : index
    %c0_98 = arith.constant 0 : index
    %194 = vector.load %arg1[%c32_97, %c0_98] : memref<36x512xf32, #tpu.memory_space<vmem>>, vector<1x512xf32>
    %195 = vector.broadcast %193 : vector<32x1xf32> to vector<32x512xf32>
    %196 = vector.broadcast %194 : vector<1x512xf32> to vector<32x512xf32>
    %197 = arith.mulf %195, %196 : vector<32x512xf32>
    %198 = arith.addf %192, %197 : vector<32x512xf32>
    %c0_99 = arith.constant 0 : index
    %c33 = arith.constant 33 : index
    %199 = vector.load %arg2[%c0_99, %c33] : memref<32x36xf32, #tpu.memory_space<vmem>>, vector<32x1xf32>
    %c33_100 = arith.constant 33 : index
    %c0_101 = arith.constant 0 : index
    %200 = vector.load %arg1[%c33_100, %c0_101] : memref<36x512xf32, #tpu.memory_space<vmem>>, vector<1x512xf32>
    %201 = vector.broadcast %199 : vector<32x1xf32> to vector<32x512xf32>
    %202 = vector.broadcast %200 : vector<1x512xf32> to vector<32x512xf32>
    %203 = arith.mulf %201, %202 : vector<32x512xf32>
    %204 = arith.addf %198, %203 : vector<32x512xf32>
    %c0_102 = arith.constant 0 : index
    %c34 = arith.constant 34 : index
    %205 = vector.load %arg2[%c0_102, %c34] : memref<32x36xf32, #tpu.memory_space<vmem>>, vector<32x1xf32>
    %c34_103 = arith.constant 34 : index
    %c0_104 = arith.constant 0 : index
    %206 = vector.load %arg1[%c34_103, %c0_104] : memref<36x512xf32, #tpu.memory_space<vmem>>, vector<1x512xf32>
    %207 = vector.broadcast %205 : vector<32x1xf32> to vector<32x512xf32>
    %208 = vector.broadcast %206 : vector<1x512xf32> to vector<32x512xf32>
    %209 = arith.mulf %207, %208 : vector<32x512xf32>
    %210 = arith.addf %204, %209 : vector<32x512xf32>
    %c0_105 = arith.constant 0 : index
    %c35 = arith.constant 35 : index
    %211 = vector.load %arg2[%c0_105, %c35] : memref<32x36xf32, #tpu.memory_space<vmem>>, vector<32x1xf32>
    %c35_106 = arith.constant 35 : index
    %c0_107 = arith.constant 0 : index
    %212 = vector.load %arg1[%c35_106, %c0_107] : memref<36x512xf32, #tpu.memory_space<vmem>>, vector<1x512xf32>
    %213 = vector.broadcast %211 : vector<32x1xf32> to vector<32x512xf32>
    %214 = vector.broadcast %212 : vector<1x512xf32> to vector<32x512xf32>
    %215 = arith.mulf %213, %214 : vector<32x512xf32>
    %216 = arith.addf %210, %215 : vector<32x512xf32>
    %cst_108 = arith.constant 0.000000e+00 : f32
    %217 = vector.broadcast %cst_108 : f32 to vector<8x1xf32>
    %218 = vector.extract_strided_slice %216 {offsets = [0, 0], sizes = [8, 512], strides = [1, 1]} : vector<32x512xf32> to vector<8x512xf32>
    %cst_109 = arith.constant dense<0.000000e+00> : vector<8xf32>
    %219 = vector.multi_reduction <add>, %218, %cst_109 [1] : vector<8x512xf32> to vector<8xf32>
    %220 = vector.shape_cast %219 : vector<8xf32> to vector<8x1xf32>
    %221 = arith.addf %217, %220 : vector<8x1xf32>
    %222 = vector.extract_strided_slice %216 {offsets = [8, 0], sizes = [8, 512], strides = [1, 1]} : vector<32x512xf32> to vector<8x512xf32>
    %cst_110 = arith.constant dense<0.000000e+00> : vector<8xf32>
    %223 = vector.multi_reduction <add>, %222, %cst_110 [1] : vector<8x512xf32> to vector<8xf32>
    %224 = vector.shape_cast %223 : vector<8xf32> to vector<8x1xf32>
    %225 = arith.addf %221, %224 : vector<8x1xf32>
    %226 = vector.extract_strided_slice %216 {offsets = [16, 0], sizes = [8, 512], strides = [1, 1]} : vector<32x512xf32> to vector<8x512xf32>
    %cst_111 = arith.constant dense<0.000000e+00> : vector<8xf32>
    %227 = vector.multi_reduction <add>, %226, %cst_111 [1] : vector<8x512xf32> to vector<8xf32>
    %228 = vector.shape_cast %227 : vector<8xf32> to vector<8x1xf32>
    %229 = arith.addf %225, %228 : vector<8x1xf32>
    %230 = vector.extract_strided_slice %216 {offsets = [24, 0], sizes = [8, 512], strides = [1, 1]} : vector<32x512xf32> to vector<8x512xf32>
    %cst_112 = arith.constant dense<0.000000e+00> : vector<8xf32>
    %231 = vector.multi_reduction <add>, %230, %cst_112 [1] : vector<8x512xf32> to vector<8xf32>
    %232 = vector.shape_cast %231 : vector<8xf32> to vector<8x1xf32>
    %233 = arith.addf %229, %232 : vector<8x1xf32>
    %cst_113 = arith.constant 4.8828125E-4 : f32
    %234 = vector.broadcast %cst_113 : f32 to vector<8x1xf32>
    %235 = arith.mulf %233, %234 : vector<8x1xf32>
    %cst_114 = arith.constant 0.000000e+00 : f32
    %236 = vector.broadcast %cst_114 : f32 to vector<8x1xf32>
    %237 = vector.extract_strided_slice %216 {offsets = [0, 0], sizes = [8, 512], strides = [1, 1]} : vector<32x512xf32> to vector<8x512xf32>
    %238 = vector.broadcast %235 : vector<8x1xf32> to vector<8x512xf32>
    %239 = arith.subf %237, %238 : vector<8x512xf32>
    %240 = arith.mulf %239, %239 : vector<8x512xf32>
    %cst_115 = arith.constant dense<0.000000e+00> : vector<8xf32>
    %241 = vector.multi_reduction <add>, %240, %cst_115 [1] : vector<8x512xf32> to vector<8xf32>
    %242 = vector.shape_cast %241 : vector<8xf32> to vector<8x1xf32>
    %243 = arith.addf %236, %242 : vector<8x1xf32>
    %244 = vector.extract_strided_slice %216 {offsets = [8, 0], sizes = [8, 512], strides = [1, 1]} : vector<32x512xf32> to vector<8x512xf32>
    %245 = vector.broadcast %235 : vector<8x1xf32> to vector<8x512xf32>
    %246 = arith.subf %244, %245 : vector<8x512xf32>
    %247 = arith.mulf %246, %246 : vector<8x512xf32>
    %cst_116 = arith.constant dense<0.000000e+00> : vector<8xf32>
    %248 = vector.multi_reduction <add>, %247, %cst_116 [1] : vector<8x512xf32> to vector<8xf32>
    %249 = vector.shape_cast %248 : vector<8xf32> to vector<8x1xf32>
    %250 = arith.addf %243, %249 : vector<8x1xf32>
    %251 = vector.extract_strided_slice %216 {offsets = [16, 0], sizes = [8, 512], strides = [1, 1]} : vector<32x512xf32> to vector<8x512xf32>
    %252 = vector.broadcast %235 : vector<8x1xf32> to vector<8x512xf32>
    %253 = arith.subf %251, %252 : vector<8x512xf32>
    %254 = arith.mulf %253, %253 : vector<8x512xf32>
    %cst_117 = arith.constant dense<0.000000e+00> : vector<8xf32>
    %255 = vector.multi_reduction <add>, %254, %cst_117 [1] : vector<8x512xf32> to vector<8xf32>
    %256 = vector.shape_cast %255 : vector<8xf32> to vector<8x1xf32>
    %257 = arith.addf %250, %256 : vector<8x1xf32>
    %258 = vector.extract_strided_slice %216 {offsets = [24, 0], sizes = [8, 512], strides = [1, 1]} : vector<32x512xf32> to vector<8x512xf32>
    %259 = vector.broadcast %235 : vector<8x1xf32> to vector<8x512xf32>
    %260 = arith.subf %258, %259 : vector<8x512xf32>
    %261 = arith.mulf %260, %260 : vector<8x512xf32>
    %cst_118 = arith.constant dense<0.000000e+00> : vector<8xf32>
    %262 = vector.multi_reduction <add>, %261, %cst_118 [1] : vector<8x512xf32> to vector<8xf32>
    %263 = vector.shape_cast %262 : vector<8xf32> to vector<8x1xf32>
    %264 = arith.addf %257, %263 : vector<8x1xf32>
    %cst_119 = arith.constant 4.8828125E-4 : f32
    %265 = vector.broadcast %cst_119 : f32 to vector<8x1xf32>
    %266 = arith.mulf %264, %265 : vector<8x1xf32>
    %c0_120 = arith.constant 0 : index
    %c0_121 = arith.constant 0 : index
    %267 = vector.load %arg3[%c0_120, %c0_121] : memref<8x1xf32, #tpu.memory_space<vmem>>, vector<8x1xf32>
    %cst_122 = arith.constant 9.99999974E-6 : f32
    %268 = vector.broadcast %cst_122 : f32 to vector<8x1xf32>
    %269 = arith.addf %266, %268 : vector<8x1xf32>
    %270 = math.rsqrt %269 : vector<8x1xf32>
    %271 = arith.mulf %267, %270 : vector<8x1xf32>
    %c0_123 = arith.constant 0 : index
    %c0_124 = arith.constant 0 : index
    %272 = vector.load %arg4[%c0_123, %c0_124] : memref<8x1xf32, #tpu.memory_space<vmem>>, vector<8x1xf32>
    %273 = arith.mulf %235, %271 : vector<8x1xf32>
    %274 = arith.subf %272, %273 : vector<8x1xf32>
    %275 = vector.extract_strided_slice %216 {offsets = [0, 0], sizes = [8, 512], strides = [1, 1]} : vector<32x512xf32> to vector<8x512xf32>
    %276 = vector.broadcast %271 : vector<8x1xf32> to vector<8x512xf32>
    %277 = arith.mulf %275, %276 : vector<8x512xf32>
    %278 = vector.broadcast %274 : vector<8x1xf32> to vector<8x512xf32>
    %279 = arith.addf %277, %278 : vector<8x512xf32>
    %cst_125 = arith.constant 0.000000e+00 : f32
    %280 = vector.broadcast %cst_125 : f32 to vector<8x512xf32>
    %281 = arith.maximumf %279, %280 : vector<8x512xf32>
    %c0_126 = arith.constant 0 : index
    %c0_127 = arith.constant 0 : index
    %282 = vector.load %arg5[%c0_126, %c0_127] : memref<32x512xf32, #tpu.memory_space<vmem>>, vector<8x512xf32>
    tpu.vector_store %arg5[%c0_126, %c0_127], %281 {strides = array<i32>} : memref<32x512xf32, #tpu.memory_space<vmem>>, vector<8x512xf32>,
    %283 = vector.extract_strided_slice %216 {offsets = [8, 0], sizes = [8, 512], strides = [1, 1]} : vector<32x512xf32> to vector<8x512xf32>
    %284 = vector.broadcast %271 : vector<8x1xf32> to vector<8x512xf32>
    %285 = arith.mulf %283, %284 : vector<8x512xf32>
    %286 = vector.broadcast %274 : vector<8x1xf32> to vector<8x512xf32>
    %287 = arith.addf %285, %286 : vector<8x512xf32>
    %cst_128 = arith.constant 0.000000e+00 : f32
    %288 = vector.broadcast %cst_128 : f32 to vector<8x512xf32>
    %289 = arith.maximumf %287, %288 : vector<8x512xf32>
    %c8_129 = arith.constant 8 : index
    %c0_130 = arith.constant 0 : index
    %290 = vector.load %arg5[%c8_129, %c0_130] : memref<32x512xf32, #tpu.memory_space<vmem>>, vector<8x512xf32>
    tpu.vector_store %arg5[%c8_129, %c0_130], %289 {strides = array<i32>} : memref<32x512xf32, #tpu.memory_space<vmem>>, vector<8x512xf32>,
    %291 = vector.extract_strided_slice %216 {offsets = [16, 0], sizes = [8, 512], strides = [1, 1]} : vector<32x512xf32> to vector<8x512xf32>
    %292 = vector.broadcast %271 : vector<8x1xf32> to vector<8x512xf32>
    %293 = arith.mulf %291, %292 : vector<8x512xf32>
    %294 = vector.broadcast %274 : vector<8x1xf32> to vector<8x512xf32>
    %295 = arith.addf %293, %294 : vector<8x512xf32>
    %cst_131 = arith.constant 0.000000e+00 : f32
    %296 = vector.broadcast %cst_131 : f32 to vector<8x512xf32>
    %297 = arith.maximumf %295, %296 : vector<8x512xf32>
    %c16_132 = arith.constant 16 : index
    %c0_133 = arith.constant 0 : index
    %298 = vector.load %arg5[%c16_132, %c0_133] : memref<32x512xf32, #tpu.memory_space<vmem>>, vector<8x512xf32>
    tpu.vector_store %arg5[%c16_132, %c0_133], %297 {strides = array<i32>} : memref<32x512xf32, #tpu.memory_space<vmem>>, vector<8x512xf32>,
    %299 = vector.extract_strided_slice %216 {offsets = [24, 0], sizes = [8, 512], strides = [1, 1]} : vector<32x512xf32> to vector<8x512xf32>
    %300 = vector.broadcast %271 : vector<8x1xf32> to vector<8x512xf32>
    %301 = arith.mulf %299, %300 : vector<8x512xf32>
    %302 = vector.broadcast %274 : vector<8x1xf32> to vector<8x512xf32>
    %303 = arith.addf %301, %302 : vector<8x512xf32>
    %cst_134 = arith.constant 0.000000e+00 : f32
    %304 = vector.broadcast %cst_134 : f32 to vector<8x512xf32>
    %305 = arith.maximumf %303, %304 : vector<8x512xf32>
    %c24_135 = arith.constant 24 : index
    %c0_136 = arith.constant 0 : index
    %306 = vector.load %arg5[%c24_135, %c0_136] : memref<32x512xf32, #tpu.memory_space<vmem>>, vector<8x512xf32>
    tpu.vector_store %arg5[%c24_135, %c0_136], %305 {strides = array<i32>} : memref<32x512xf32, #tpu.memory_space<vmem>>, vector<8x512xf32>,
    return
  }
  func.func @transform_0(%arg0: i32) -> (i32, i32) {
    %c0_i32 = arith.constant 0 : i32
    %c0_i32_0 = arith.constant 0 : i32
    %c0_i32_1 = arith.constant 0 : i32
    return %c0_i32, %c0_i32_0 : i32, i32
  }
  func.func @transform_1(%arg0: i32) -> (i32, i32) {
    %c0_i32 = arith.constant 0 : i32
    %c0_i32_0 = arith.constant 0 : i32
    %c0_i32_1 = arith.constant 0 : i32
    return %c0_i32, %c0_i32_0 : i32, i32
  }
  func.func @transform_2(%arg0: i32) -> (i32, i32) {
    %c0_i32 = arith.constant 0 : i32
    %c0_i32_0 = arith.constant 0 : i32
    %c0_i32_1 = arith.constant 0 : i32
    return %c0_i32, %c0_i32_0 : i32, i32
  }
  func.func @transform_3(%arg0: i32) -> (i32, i32) {
    %c0_i32 = arith.constant 0 : i32
    %c0_i32_0 = arith.constant 0 : i32
    %c0_i32_1 = arith.constant 0 : i32
    return %c0_i32, %c0_i32_0 : i32, i32
  }
  func.func @transform_4(%arg0: i32) -> (i32, i32) {
    %c0_i32 = arith.constant 0 : i32
    %c0_i32_0 = arith.constant 0 : i32
    %c0_i32_1 = arith.constant 0 : i32
    return %c0_i32, %c0_i32_0 : i32, i32
  }
}

</mosaic_0001>

<llo_original>
// kernel: deconv2d_block.1
$region0: #{deconv2d_block.1}
  #allocation0 [shape = 'u32[]', space=smem, size = 0x4, offset = 0x4, fixed_abs, tag = 'smem constant byte address 0x4 - core index']
  #allocation1 [shape = 'u32[144,128]{1,0:T(1,128)}', space=vmem, size = 0x12000, scoped, tag = 'internal scratch']
  %s0 = inlined_call_operand.vmem [shape: f32[36,512], index: 0, kind: input, shape index: {}]
  %s1 = inlined_call_operand.vmem [shape: f32[32,36], index: 1, kind: input, shape index: {}]
  %s2 = inlined_call_operand.vmem [shape: f32[8,1], index: 2, kind: input, shape index: {}]
  %s3 = inlined_call_operand.vmem [shape: f32[8,1], index: 3, kind: input, shape index: {}]
  %s4 = inlined_call_operand.vmem [shape: f32[32,512], index: 4, kind: output, shape index: {}]
  %s5 = sld [smem:[#allocation0]]
  $region26: #{deconv2d_block.1} parent=0
    _
  %s7 = ssub.s32 1, %s5
  %s8 = scalar_select 0, %s7, %s5
  // Predicated region
  $region2: #{deconv2d_block.1} parent=0 // pred_check
    _
  $region3: #{deconv2d_block.1} parent=0 // pred_check_branch
    %10 = sbr.rel (0) target = $region5
  $region4: #{deconv2d_block.1} parent=0 // pred_region
    _
  $region5: #{deconv2d_block.1} parent=0 // pred_fallthru
    _
  // Predicated region
  $region6: #{deconv2d_block.1} parent=0 // pred_check
    _
  $region7: #{deconv2d_block.1} parent=0 // pred_check_branch
    %12 = sbr.rel (0) target = $region9
  $region8: #{deconv2d_block.1} parent=0 // pred_region
    _
  $region9: #{deconv2d_block.1} parent=0 // pred_fallthru
    _
  // Predicated region
  $region10: #{deconv2d_block.1} parent=0 // pred_check
    _
  $region11: #{deconv2d_block.1} parent=0 // pred_check_branch
    %14 = sbr.rel (0) target = $region13
  $region12: #{deconv2d_block.1} parent=0 // pred_region
    _
  $region13: #{deconv2d_block.1} parent=0 // pred_fallthru
    _
  // Predicated region
  $region14: #{deconv2d_block.1} parent=0 // pred_check
    _
  $region15: #{deconv2d_block.1} parent=0 // pred_check_branch
    %16 = sbr.rel (0) target = $region17
  $region16: #{deconv2d_block.1} parent=0 // pred_region
    _
  $region17: #{deconv2d_block.1} parent=0 // pred_fallthru
    _
  %v17 = vld [vmem:[%s1] sm:$0xff]
  %v18 = vld [vmem:[%s1 + $0x8] sm:$0xff]
  %v19 = vld [vmem:[%s1 + $0x10] sm:$0xff]
  %v20 = vld [vmem:[%s1 + $0x18] sm:$0xff]
  %v21 = vld [vmem:[%s0] ss:$8 sm:$0xf]
  %23 = vset.pattern.permute.xlu0 0
  %24 = vperm.xlu0 %23, %v17
  %v25 = vpop.permute.xlu0 %24
  %28 = vset.pattern.permute.xlu0 0
  %29 = vperm.xlu0 %28, %v18
  %v30 = vpop.permute.xlu0 %29
  %33 = vset.pattern.permute.xlu0 0
  %34 = vperm.xlu0 %33, %v19
  %v35 = vpop.permute.xlu0 %34
  %38 = vset.pattern.permute.xlu0 0
  %39 = vperm.xlu0 %38, %v20
  %v40 = vpop.permute.xlu0 %39
  %v43 = vlaneseq
  %v44 = vshrl.u32 %v43, 7
  %v45 = vsub.s32 0, %v44
  %v46 = vrot.slane %v21, %v45
  %v47 = vlaneseq
  %v48 = vshrl.u32 %v47, 7
  %v49 = vsub.s32 1, %v48
  %v50 = vrot.slane %v21, %v49
  %v51 = vlaneseq
  %v52 = vshrl.u32 %v51, 7
  %v53 = vsub.s32 2, %v52
  %v54 = vrot.slane %v21, %v53
  %v55 = vlaneseq
  %v56 = vshrl.u32 %v55, 7
  %v57 = vsub.s32 3, %v56
  %v58 = vrot.slane %v21, %v57
  %v63 = vmul.f32 %v25, %v46
  %v64 = vmul.f32 %v25, %v50
  %v65 = vmul.f32 %v25, %v54
  %v66 = vmul.f32 %v25, %v58
  %v67 = vmul.f32 %v30, %v46
  %v68 = vmul.f32 %v30, %v50
  %v69 = vmul.f32 %v30, %v54
  %v70 = vmul.f32 %v30, %v58
  %v71 = vmul.f32 %v35, %v46
  %v72 = vmul.f32 %v35, %v50
  %v73 = vmul.f32 %v35, %v54
  %v74 = vmul.f32 %v35, %v58
  %v75 = vmul.f32 %v40, %v46
  %v76 = vmul.f32 %v40, %v50
  %v77 = vmul.f32 %v40, %v54
  %v78 = vmul.f32 %v40, %v58
  %v79 = vadd.f32 %v63, 0.0
  %v80 = vadd.f32 %v64, 0.0
  %v81 = vadd.f32 %v65, 0.0
  %v82 = vadd.f32 %v66, 0.0
  %v83 = vadd.f32 %v67, 0.0
  %v84 = vadd.f32 %v68, 0.0
  %v85 = vadd.f32 %v69, 0.0
  %v86 = vadd.f32 %v70, 0.0
  %v87 = vadd.f32 %v71, 0.0
  %v88 = vadd.f32 %v72, 0.0
  %v89 = vadd.f32 %v73, 0.0
  %v90 = vadd.f32 %v74, 0.0
  %v91 = vadd.f32 %v75, 0.0
  %v92 = vadd.f32 %v76, 0.0
  %v93 = vadd.f32 %v77, 0.0
  %v94 = vadd.f32 %v78, 0.0
  %s95 = scalar_lea.vmem %s0, 1
  %v96 = vld [vmem:[%s95] ss:$8 sm:$0xf]
  %97 = vset.pattern.permute.xlu0 1
  %98 = vperm.xlu0 %97, %v17
  %v99 = vpop.permute.xlu0 %98
  %101 = vset.pattern.permute.xlu0 1
  %102 = vperm.xlu0 %101, %v18
  %v103 = vpop.permute.xlu0 %102
  %105 = vset.pattern.permute.xlu0 1
  %106 = vperm.xlu0 %105, %v19
  %v107 = vpop.permute.xlu0 %106
  %109 = vset.pattern.permute.xlu0 1
  %110 = vperm.xlu0 %109, %v20
  %v111 = vpop.permute.xlu0 %110
  %v114 = vlaneseq
  %v115 = vshrl.u32 %v114, 7
  %v116 = vsub.s32 0, %v115
  %v117 = vrot.slane %v96, %v116
  %v118 = vlaneseq
  %v119 = vshrl.u32 %v118, 7
  %v120 = vsub.s32 1, %v119
  %v121 = vrot.slane %v96, %v120
  %v122 = vlaneseq
  %v123 = vshrl.u32 %v122, 7
  %v124 = vsub.s32 2, %v123
  %v125 = vrot.slane %v96, %v124
  %v126 = vlaneseq
  %v127 = vshrl.u32 %v126, 7
  %v128 = vsub.s32 3, %v127
  %v129 = vrot.slane %v96, %v128
  %v134 = vmul.f32 %v99, %v117
  %v135 = vmul.f32 %v99, %v121
  %v136 = vmul.f32 %v99, %v125
  %v137 = vmul.f32 %v99, %v129
  %v138 = vmul.f32 %v103, %v117
  %v139 = vmul.f32 %v103, %v121
  %v140 = vmul.f32 %v103, %v125
  %v141 = vmul.f32 %v103, %v129
  %v142 = vmul.f32 %v107, %v117
  %v143 = vmul.f32 %v107, %v121
  %v144 = vmul.f32 %v107, %v125
  %v145 = vmul.f32 %v107, %v129
  %v146 = vmul.f32 %v111, %v117
  %v147 = vmul.f32 %v111, %v121
  %v148 = vmul.f32 %v111, %v125
  %v149 = vmul.f32 %v111, %v129
  %v150 = vadd.f32 %v79, %v134
  %v151 = vadd.f32 %v80, %v135
  %v152 = vadd.f32 %v81, %v136
  %v153 = vadd.f32 %v82, %v137
  %v154 = vadd.f32 %v83, %v138
  %v155 = vadd.f32 %v84, %v139
  %v156 = vadd.f32 %v85, %v140
  %v157 = vadd.f32 %v86, %v141
  %v158 = vadd.f32 %v87, %v142
  %v159 = vadd.f32 %v88, %v143
  %v160 = vadd.f32 %v89, %v144
  %v161 = vadd.f32 %v90, %v145
  %v162 = vadd.f32 %v91, %v146
  %v163 = vadd.f32 %v92, %v147
  %v164 = vadd.f32 %v93, %v148
  %v165 = vadd.f32 %v94, %v149
  %s166 = scalar_lea.vmem %s0, 2
  %v167 = vld [vmem:[%s166] ss:$8 sm:$0xf]
  %168 = vset.pattern.permute.xlu0 2
  %169 = vperm.xlu0 %168, %v17
  %v170 = vpop.permute.xlu0 %169
  %172 = vset.pattern.permute.xlu0 2
  %173 = vperm.xlu0 %172, %v18
  %v174 = vpop.permute.xlu0 %173
  %176 = vset.pattern.permute.xlu0 2
  %177 = vperm.xlu0 %176, %v19
  %v178 = vpop.permute.xlu0 %177
  %180 = vset.pattern.permute.xlu0 2
  %181 = vperm.xlu0 %180, %v20
  %v182 = vpop.permute.xlu0 %181
  %v185 = vlaneseq
  %v186 = vshrl.u32 %v185, 7
  %v187 = vsub.s32 0, %v186
  %v188 = vrot.slane %v167, %v187
  %v189 = vlaneseq
  %v190 = vshrl.u32 %v189, 7
  %v191 = vsub.s32 1, %v190
  %v192 = vrot.slane %v167, %v191
  %v193 = vlaneseq
  %v194 = vshrl.u32 %v193, 7
  %v195 = vsub.s32 2, %v194
  %v196 = vrot.slane %v167, %v195
  %v197 = vlaneseq
  %v198 = vshrl.u32 %v197, 7
  %v199 = vsub.s32 3, %v198
  %v200 = vrot.slane %v167, %v199
  %v205 = vmul.f32 %v170, %v188
  %v206 = vmul.f32 %v170, %v192
  %v207 = vmul.f32 %v170, %v196
  %v208 = vmul.f32 %v170, %v200
  %v209 = vmul.f32 %v174, %v188
  %v210 = vmul.f32 %v174, %v192
  %v211 = vmul.f32 %v174, %v196
  %v212 = vmul.f32 %v174, %v200
  %v213 = vmul.f32 %v178, %v188
  %v214 = vmul.f32 %v178, %v192
  %v215 = vmul.f32 %v178, %v196
  %v216 = vmul.f32 %v178, %v200
  %v217 = vmul.f32 %v182, %v188
  %v218 = vmul.f32 %v182, %v192
  %v219 = vmul.f32 %v182, %v196
  %v220 = vmul.f32 %v182, %v200
  %v221 = vadd.f32 %v150, %v205
  %v222 = vadd.f32 %v151, %v206
  %v223 = vadd.f32 %v152, %v207
  %v224 = vadd.f32 %v153, %v208
  %v225 = vadd.f32 %v154, %v209
  %v226 = vadd.f32 %v155, %v210
  %v227 = vadd.f32 %v156, %v211
  %v228 = vadd.f32 %v157, %v212
  %v229 = vadd.f32 %v158, %v213
  %v230 = vadd.f32 %v159, %v214
  %v231 = vadd.f32 %v160, %v215
  %v232 = vadd.f32 %v161, %v216
  %v233 = vadd.f32 %v162, %v217
  %v234 = vadd.f32 %v163, %v218
  %v235 = vadd.f32 %v164, %v219
  %v236 = vadd.f32 %v165, %v220
  %s237 = scalar_lea.vmem %s0, 3
  %v238 = vld [vmem:[%s237] ss:$8 sm:$0xf]
  %239 = vset.pattern.permute.xlu0 3
  %240 = vperm.xlu0 %239, %v17
  %v241 = vpop.permute.xlu0 %240
  %243 = vset.pattern.permute.xlu0 3
  %244 = vperm.xlu0 %243, %v18
  %v245 = vpop.permute.xlu0 %244
  %247 = vset.pattern.permute.xlu0 3
  %248 = vperm.xlu0 %247, %v19
  %v249 = vpop.permute.xlu0 %248
  %251 = vset.pattern.permute.xlu0 3
  %252 = vperm.xlu0 %251, %v20
  %v253 = vpop.permute.xlu0 %252
  %v256 = vlaneseq
  %v257 = vshrl.u32 %v256, 7
  %v258 = vsub.s32 0, %v257
  %v259 = vrot.slane %v238, %v258
  %v260 = vlaneseq
  %v261 = vshrl.u32 %v260, 7
  %v262 = vsub.s32 1, %v261
  %v263 = vrot.slane %v238, %v262
  %v264 = vlaneseq
  %v265 = vshrl.u32 %v264, 7
  %v266 = vsub.s32 2, %v265
  %v267 = vrot.slane %v238, %v266
  %v268 = vlaneseq
  %v269 = vshrl.u32 %v268, 7
  %v270 = vsub.s32 3, %v269
  %v271 = vrot.slane %v238, %v270
  %v276 = vmul.f32 %v241, %v259
  %v277 = vmul.f32 %v241, %v263
  %v278 = vmul.f32 %v241, %v267
  %v279 = vmul.f32 %v241, %v271
  %v280 = vmul.f32 %v245, %v259
  %v281 = vmul.f32 %v245, %v263
  %v282 = vmul.f32 %v245, %v267
  %v283 = vmul.f32 %v245, %v271
  %v284 = vmul.f32 %v249, %v259
  %v285 = vmul.f32 %v249, %v263
  %v286 = vmul.f32 %v249, %v267
  %v287 = vmul.f32 %v249, %v271
  %v288 = vmul.f32 %v253, %v259
  %v289 = vmul.f32 %v253, %v263
  %v290 = vmul.f32 %v253, %v267
  %v291 = vmul.f32 %v253, %v271
  %v292 = vadd.f32 %v221, %v276
  %v293 = vadd.f32 %v222, %v277
  %v294 = vadd.f32 %v223, %v278
  %v295 = vadd.f32 %v224, %v279
  %v296 = vadd.f32 %v225, %v280
  %v297 = vadd.f32 %v226, %v281
  %v298 = vadd.f32 %v227, %v282
  %v299 = vadd.f32 %v228, %v283
  %v300 = vadd.f32 %v229, %v284
  %v301 = vadd.f32 %v230, %v285
  %v302 = vadd.f32 %v231, %v286
  %v303 = vadd.f32 %v232, %v287
  %v304 = vadd.f32 %v233, %v288
  %v305 = vadd.f32 %v234, %v289
  %v306 = vadd.f32 %v235, %v290
  %v307 = vadd.f32 %v236, %v291
  %s308 = scalar_lea.vmem %s0, 4
  %v309 = vld [vmem:[%s308] ss:$8 sm:$0xf]
  %310 = vset.pattern.permute.xlu0 4
  %311 = vperm.xlu0 %310, %v17
  %v312 = vpop.permute.xlu0 %311
  %314 = vset.pattern.permute.xlu0 4
  %315 = vperm.xlu0 %314, %v18
  %v316 = vpop.permute.xlu0 %315
  %318 = vset.pattern.permute.xlu0 4
  %319 = vperm.xlu0 %318, %v19
  %v320 = vpop.permute.xlu0 %319
  %322 = vset.pattern.permute.xlu0 4
  %323 = vperm.xlu0 %322, %v20
  %v324 = vpop.permute.xlu0 %323
  %v327 = vlaneseq
  %v328 = vshrl.u32 %v327, 7
  %v329 = vsub.s32 0, %v328
  %v330 = vrot.slane %v309, %v329
  %v331 = vlaneseq
  %v332 = vshrl.u32 %v331, 7
  %v333 = vsub.s32 1, %v332
  %v334 = vrot.slane %v309, %v333
  %v335 = vlaneseq
  %v336 = vshrl.u32 %v335, 7
  %v337 = vsub.s32 2, %v336
  %v338 = vrot.slane %v309, %v337
  %v339 = vlaneseq
  %v340 = vshrl.u32 %v339, 7
  %v341 = vsub.s32 3, %v340
  %v342 = vrot.slane %v309, %v341
  %v347 = vmul.f32 %v312, %v330
  %v348 = vmul.f32 %v312, %v334
  %v349 = vmul.f32 %v312, %v338
  %v350 = vmul.f32 %v312, %v342
  %v351 = vmul.f32 %v316, %v330
  %v352 = vmul.f32 %v316, %v334
  %v353 = vmul.f32 %v316, %v338
  %v354 = vmul.f32 %v316, %v342
  %v355 = vmul.f32 %v320, %v330
  %v356 = vmul.f32 %v320, %v334
  %v357 = vmul.f32 %v320, %v338
  %v358 = vmul.f32 %v320, %v342
  %v359 = vmul.f32 %v324, %v330
  %v360 = vmul.f32 %v324, %v334
  %v361 = vmul.f32 %v324, %v338
  %v362 = vmul.f32 %v324, %v342
  %v363 = vadd.f32 %v292, %v347
  %v364 = vadd.f32 %v293, %v348
  %v365 = vadd.f32 %v294, %v349
  %v366 = vadd.f32 %v295, %v350
  %v367 = vadd.f32 %v296, %v351
  %v368 = vadd.f32 %v297, %v352
  %v369 = vadd.f32 %v298, %v353
  %v370 = vadd.f32 %v299, %v354
  %v371 = vadd.f32 %v300, %v355
  %v372 = vadd.f32 %v301, %v356
  %v373 = vadd.f32 %v302, %v357
  %v374 = vadd.f32 %v303, %v358
  %v375 = vadd.f32 %v304, %v359
  %v376 = vadd.f32 %v305, %v360
  %v377 = vadd.f32 %v306, %v361
  %v378 = vadd.f32 %v307, %v362
  %s379 = scalar_lea.vmem %s0, 5
  %v380 = vld [vmem:[%s379] ss:$8 sm:$0xf]
  %381 = vset.pattern.permute.xlu0 5
  %382 = vperm.xlu0 %381, %v17
  %v383 = vpop.permute.xlu0 %382
  %385 = vset.pattern.permute.xlu0 5
  %386 = vperm.xlu0 %385, %v18
  %v387 = vpop.permute.xlu0 %386
  %389 = vset.pattern.permute.xlu0 5
  %390 = vperm.xlu0 %389, %v19
  %v391 = vpop.permute.xlu0 %390
  %393 = vset.pattern.permute.xlu0 5
  %394 = vperm.xlu0 %393, %v20
  %v395 = vpop.permute.xlu0 %394
  %v398 = vlaneseq
  %v399 = vshrl.u32 %v398, 7
  %v400 = vsub.s32 0, %v399
  %v401 = vrot.slane %v380, %v400
  %v402 = vlaneseq
  %v403 = vshrl.u32 %v402, 7
  %v404 = vsub.s32 1, %v403
  %v405 = vrot.slane %v380, %v404
  %v406 = vlaneseq
  %v407 = vshrl.u32 %v406, 7
  %v408 = vsub.s32 2, %v407
  %v409 = vrot.slane %v380, %v408
  %v410 = vlaneseq
  %v411 = vshrl.u32 %v410, 7
  %v412 = vsub.s32 3, %v411
  %v413 = vrot.slane %v380, %v412
  %v418 = vmul.f32 %v383, %v401
  %v419 = vmul.f32 %v383, %v405
  %v420 = vmul.f32 %v383, %v409
  %v421 = vmul.f32 %v383, %v413
  %v422 = vmul.f32 %v387, %v401
  %v423 = vmul.f32 %v387, %v405
  %v424 = vmul.f32 %v387, %v409
  %v425 = vmul.f32 %v387, %v413
  %v426 = vmul.f32 %v391, %v401
  %v427 = vmul.f32 %v391, %v405
  %v428 = vmul.f32 %v391, %v409
  %v429 = vmul.f32 %v391, %v413
  %v430 = vmul.f32 %v395, %v401
  %v431 = vmul.f32 %v395, %v405
  %v432 = vmul.f32 %v395, %v409
  %v433 = vmul.f32 %v395, %v413
  %v434 = vadd.f32 %v363, %v418
  %v435 = vadd.f32 %v364, %v419
  %v436 = vadd.f32 %v365, %v420
  %v437 = vadd.f32 %v366, %v421
  %v438 = vadd.f32 %v367, %v422
  %v439 = vadd.f32 %v368, %v423
  %v440 = vadd.f32 %v369, %v424
  %v441 = vadd.f32 %v370, %v425
  %v442 = vadd.f32 %v371, %v426
  %v443 = vadd.f32 %v372, %v427
  %v444 = vadd.f32 %v373, %v428
  %v445 = vadd.f32 %v374, %v429
  %v446 = vadd.f32 %v375, %v430
  %v447 = vadd.f32 %v376, %v431
  %v448 = vadd.f32 %v377, %v432
  %v449 = vadd.f32 %v378, %v433
  %s450 = scalar_lea.vmem %s0, 6
  %v451 = vld [vmem:[%s450] ss:$8 sm:$0xf]
  %452 = vset.pattern.permute.xlu0 6
  %453 = vperm.xlu0 %452, %v17
  %v454 = vpop.permute.xlu0 %453
  %456 = vset.pattern.permute.xlu0 6
  %457 = vperm.xlu0 %456, %v18
  %v458 = vpop.permute.xlu0 %457
  %460 = vset.pattern.permute.xlu0 6
  %461 = vperm.xlu0 %460, %v19
  %v462 = vpop.permute.xlu0 %461
  %464 = vset.pattern.permute.xlu0 6
  %465 = vperm.xlu0 %464, %v20
  %v466 = vpop.permute.xlu0 %465
  %v469 = vlaneseq
  %v470 = vshrl.u32 %v469, 7
  %v471 = vsub.s32 0, %v470
  %v472 = vrot.slane %v451, %v471
  %v473 = vlaneseq
  %v474 = vshrl.u32 %v473, 7
  %v475 = vsub.s32 1, %v474
  %v476 = vrot.slane %v451, %v475
  %v477 = vlaneseq
  %v478 = vshrl.u32 %v477, 7
  %v479 = vsub.s32 2, %v478
  %v480 = vrot.slane %v451, %v479
  %v481 = vlaneseq
  %v482 = vshrl.u32 %v481, 7
  %v483 = vsub.s32 3, %v482
  %v484 = vrot.slane %v451, %v483
  %v489 = vmul.f32 %v454, %v472
  %v490 = vmul.f32 %v454, %v476
  %v491 = vmul.f32 %v454, %v480
  %v492 = vmul.f32 %v454, %v484
  %v493 = vmul.f32 %v458, %v472
  %v494 = vmul.f32 %v458, %v476
  %v495 = vmul.f32 %v458, %v480
  %v496 = vmul.f32 %v458, %v484
  %v497 = vmul.f32 %v462, %v472
  %v498 = vmul.f32 %v462, %v476
  %v499 = vmul.f32 %v462, %v480
  %v500 = vmul.f32 %v462, %v484
  %v501 = vmul.f32 %v466, %v472
  %v502 = vmul.f32 %v466, %v476
  %v503 = vmul.f32 %v466, %v480
  %v504 = vmul.f32 %v466, %v484
  %v505 = vadd.f32 %v434, %v489
  %v506 = vadd.f32 %v435, %v490
  %v507 = vadd.f32 %v436, %v491
  %v508 = vadd.f32 %v437, %v492
  %v509 = vadd.f32 %v438, %v493
  %v510 = vadd.f32 %v439, %v494
  %v511 = vadd.f32 %v440, %v495
  %v512 = vadd.f32 %v441, %v496
  %v513 = vadd.f32 %v442, %v497
  %v514 = vadd.f32 %v443, %v498
  %v515 = vadd.f32 %v444, %v499
  %v516 = vadd.f32 %v445, %v500
  %v517 = vadd.f32 %v446, %v501
  %v518 = vadd.f32 %v447, %v502
  %v519 = vadd.f32 %v448, %v503
  %v520 = vadd.f32 %v449, %v504
  %s521 = scalar_lea.vmem %s0, 7
  %v522 = vld [vmem:[%s521] ss:$8 sm:$0xf]
  %523 = vset.pattern.permute.xlu0 7
  %524 = vperm.xlu0 %523, %v17
  %v525 = vpop.permute.xlu0 %524
  %527 = vset.pattern.permute.xlu0 7
  %528 = vperm.xlu0 %527, %v18
  %v529 = vpop.permute.xlu0 %528
  %531 = vset.pattern.permute.xlu0 7
  %532 = vperm.xlu0 %531, %v19
  %v533 = vpop.permute.xlu0 %532
  %535 = vset.pattern.permute.xlu0 7
  %536 = vperm.xlu0 %535, %v20
  %v537 = vpop.permute.xlu0 %536
  %v540 = vlaneseq
  %v541 = vshrl.u32 %v540, 7
  %v542 = vsub.s32 0, %v541
  %v543 = vrot.slane %v522, %v542
  %v544 = vlaneseq
  %v545 = vshrl.u32 %v544, 7
  %v546 = vsub.s32 1, %v545
  %v547 = vrot.slane %v522, %v546
  %v548 = vlaneseq
  %v549 = vshrl.u32 %v548, 7
  %v550 = vsub.s32 2, %v549
  %v551 = vrot.slane %v522, %v550
  %v552 = vlaneseq
  %v553 = vshrl.u32 %v552, 7
  %v554 = vsub.s32 3, %v553
  %v555 = vrot.slane %v522, %v554
  %v560 = vmul.f32 %v525, %v543
  %v561 = vmul.f32 %v525, %v547
  %v562 = vmul.f32 %v525, %v551
  %v563 = vmul.f32 %v525, %v555
  %v564 = vmul.f32 %v529, %v543
  %v565 = vmul.f32 %v529, %v547
  %v566 = vmul.f32 %v529, %v551
  %v567 = vmul.f32 %v529, %v555
  %v568 = vmul.f32 %v533, %v543
  %v569 = vmul.f32 %v533, %v547
  %v570 = vmul.f32 %v533, %v551
  %v571 = vmul.f32 %v533, %v555
  %v572 = vmul.f32 %v537, %v543
  %v573 = vmul.f32 %v537, %v547
  %v574 = vmul.f32 %v537, %v551
  %v575 = vmul.f32 %v537, %v555
  %v576 = vadd.f32 %v505, %v560
  %v577 = vadd.f32 %v506, %v561
  %v578 = vadd.f32 %v507, %v562
  %v579 = vadd.f32 %v508, %v563
  %v580 = vadd.f32 %v509, %v564
  %v581 = vadd.f32 %v510, %v565
  %v582 = vadd.f32 %v511, %v566
  %v583 = vadd.f32 %v512, %v567
  %v584 = vadd.f32 %v513, %v568
  %v585 = vadd.f32 %v514, %v569
  %v586 = vadd.f32 %v515, %v570
  %v587 = vadd.f32 %v516, %v571
  %v588 = vadd.f32 %v517, %v572
  %v589 = vadd.f32 %v518, %v573
  %v590 = vadd.f32 %v519, %v574
  %v591 = vadd.f32 %v520, %v575
  %s592 = scalar_lea.vmem %s0, 32
  %v593 = vld [vmem:[%s592] ss:$8 sm:$0xf]
  %594 = vset.pattern.permute.xlu0 8
  %595 = vperm.xlu0 %594, %v17
  %v596 = vpop.permute.xlu0 %595
  %598 = vset.pattern.permute.xlu0 8
  %599 = vperm.xlu0 %598, %v18
  %v600 = vpop.permute.xlu0 %599
  %602 = vset.pattern.permute.xlu0 8
  %603 = vperm.xlu0 %602, %v19
  %v604 = vpop.permute.xlu0 %603
  %606 = vset.pattern.permute.xlu0 8
  %607 = vperm.xlu0 %606, %v20
  %v608 = vpop.permute.xlu0 %607
  %v611 = vlaneseq
  %v612 = vshrl.u32 %v611, 7
  %v613 = vsub.s32 0, %v612
  %v614 = vrot.slane %v593, %v613
  %v615 = vlaneseq
  %v616 = vshrl.u32 %v615, 7
  %v617 = vsub.s32 1, %v616
  %v618 = vrot.slane %v593, %v617
  %v619 = vlaneseq
  %v620 = vshrl.u32 %v619, 7
  %v621 = vsub.s32 2, %v620
  %v622 = vrot.slane %v593, %v621
  %v623 = vlaneseq
  %v624 = vshrl.u32 %v623, 7
  %v625 = vsub.s32 3, %v624
  %v626 = vrot.slane %v593, %v625
  %v631 = vmul.f32 %v596, %v614
  %v632 = vmul.f32 %v596, %v618
  %v633 = vmul.f32 %v596, %v622
  %v634 = vmul.f32 %v596, %v626
  %v635 = vmul.f32 %v600, %v614
  %v636 = vmul.f32 %v600, %v618
  %v637 = vmul.f32 %v600, %v622
  %v638 = vmul.f32 %v600, %v626
  %v639 = vmul.f32 %v604, %v614
  %v640 = vmul.f32 %v604, %v618
  %v641 = vmul.f32 %v604, %v622
  %v642 = vmul.f32 %v604, %v626
  %v643 = vmul.f32 %v608, %v614
  %v644 = vmul.f32 %v608, %v618
  %v645 = vmul.f32 %v608, %v622
  %v646 = vmul.f32 %v608, %v626
  %v647 = vadd.f32 %v576, %v631
  %v648 = vadd.f32 %v577, %v632
  %v649 = vadd.f32 %v578, %v633
  %v650 = vadd.f32 %v579, %v634
  %v651 = vadd.f32 %v580, %v635
  %v652 = vadd.f32 %v581, %v636
  %v653 = vadd.f32 %v582, %v637
  %v654 = vadd.f32 %v583, %v638
  %v655 = vadd.f32 %v584, %v639
  %v656 = vadd.f32 %v585, %v640
  %v657 = vadd.f32 %v586, %v641
  %v658 = vadd.f32 %v587, %v642
  %v659 = vadd.f32 %v588, %v643
  %v660 = vadd.f32 %v589, %v644
  %v661 = vadd.f32 %v590, %v645
  %v662 = vadd.f32 %v591, %v646
  %s663 = scalar_lea.vmem %s0, 33
  %v664 = vld [vmem:[%s663] ss:$8 sm:$0xf]
  %665 = vset.pattern.permute.xlu0 9
  %666 = vperm.xlu0 %665, %v17
  %v667 = vpop.permute.xlu0 %666
  %669 = vset.pattern.permute.xlu0 9
  %670 = vperm.xlu0 %669, %v18
  %v671 = vpop.permute.xlu0 %670
  %673 = vset.pattern.permute.xlu0 9
  %674 = vperm.xlu0 %673, %v19
  %v675 = vpop.permute.xlu0 %674
  %677 = vset.pattern.permute.xlu0 9
  %678 = vperm.xlu0 %677, %v20
  %v679 = vpop.permute.xlu0 %678
  %v682 = vlaneseq
  %v683 = vshrl.u32 %v682, 7
  %v684 = vsub.s32 0, %v683
  %v685 = vrot.slane %v664, %v684
  %v686 = vlaneseq
  %v687 = vshrl.u32 %v686, 7
  %v688 = vsub.s32 1, %v687
  %v689 = vrot.slane %v664, %v688
  %v690 = vlaneseq
  %v691 = vshrl.u32 %v690, 7
  %v692 = vsub.s32 2, %v691
  %v693 = vrot.slane %v664, %v692
  %v694 = vlaneseq
  %v695 = vshrl.u32 %v694, 7
  %v696 = vsub.s32 3, %v695
  %v697 = vrot.slane %v664, %v696
  %v702 = vmul.f32 %v667, %v685
  %v703 = vmul.f32 %v667, %v689
  %v704 = vmul.f32 %v667, %v693
  %v705 = vmul.f32 %v667, %v697
  %v706 = vmul.f32 %v671, %v685
  %v707 = vmul.f32 %v671, %v689
  %v708 = vmul.f32 %v671, %v693
  %v709 = vmul.f32 %v671, %v697
  %v710 = vmul.f32 %v675, %v685
  %v711 = vmul.f32 %v675, %v689
  %v712 = vmul.f32 %v675, %v693
  %v713 = vmul.f32 %v675, %v697
  %v714 = vmul.f32 %v679, %v685
  %v715 = vmul.f32 %v679, %v689
  %v716 = vmul.f32 %v679, %v693
  %v717 = vmul.f32 %v679, %v697
  %v718 = vadd.f32 %v647, %v702
  %v719 = vadd.f32 %v648, %v703
  %v720 = vadd.f32 %v649, %v704
  %v721 = vadd.f32 %v650, %v705
  %v722 = vadd.f32 %v651, %v706
  %v723 = vadd.f32 %v652, %v707
  %v724 = vadd.f32 %v653, %v708
  %v725 = vadd.f32 %v654, %v709
  %v726 = vadd.f32 %v655, %v710
  %v727 = vadd.f32 %v656, %v711
  %v728 = vadd.f32 %v657, %v712
  %v729 = vadd.f32 %v658, %v713
  %v730 = vadd.f32 %v659, %v714
  %v731 = vadd.f32 %v660, %v715
  %v732 = vadd.f32 %v661, %v716
  %v733 = vadd.f32 %v662, %v717
  %s734 = scalar_lea.vmem %s0, 34
  %v735 = vld [vmem:[%s734] ss:$8 sm:$0xf]
  %736 = vset.pattern.permute.xlu0 10
  %737 = vperm.xlu0 %736, %v17
  %v738 = vpop.permute.xlu0 %737
  %740 = vset.pattern.permute.xlu0 10
  %741 = vperm.xlu0 %740, %v18
  %v742 = vpop.permute.xlu0 %741
  %744 = vset.pattern.permute.xlu0 10
  %745 = vperm.xlu0 %744, %v19
  %v746 = vpop.permute.xlu0 %745
  %748 = vset.pattern.permute.xlu0 10
  %749 = vperm.xlu0 %748, %v20
  %v750 = vpop.permute.xlu0 %749
  %v753 = vlaneseq
  %v754 = vshrl.u32 %v753, 7
  %v755 = vsub.s32 0, %v754
  %v756 = vrot.slane %v735, %v755
  %v757 = vlaneseq
  %v758 = vshrl.u32 %v757, 7
  %v759 = vsub.s32 1, %v758
  %v760 = vrot.slane %v735, %v759
  %v761 = vlaneseq
  %v762 = vshrl.u32 %v761, 7
  %v763 = vsub.s32 2, %v762
  %v764 = vrot.slane %v735, %v763
  %v765 = vlaneseq
  %v766 = vshrl.u32 %v765, 7
  %v767 = vsub.s32 3, %v766
  %v768 = vrot.slane %v735, %v767
  %v773 = vmul.f32 %v738, %v756
  %v774 = vmul.f32 %v738, %v760
  %v775 = vmul.f32 %v738, %v764
  %v776 = vmul.f32 %v738, %v768
  %v777 = vmul.f32 %v742, %v756
  %v778 = vmul.f32 %v742, %v760
  %v779 = vmul.f32 %v742, %v764
  %v780 = vmul.f32 %v742, %v768
  %v781 = vmul.f32 %v746, %v756
  %v782 = vmul.f32 %v746, %v760
  %v783 = vmul.f32 %v746, %v764
  %v784 = vmul.f32 %v746, %v768
  %v785 = vmul.f32 %v750, %v756
  %v786 = vmul.f32 %v750, %v760
  %v787 = vmul.f32 %v750, %v764
  %v788 = vmul.f32 %v750, %v768
  %v789 = vadd.f32 %v718, %v773
  %v790 = vadd.f32 %v719, %v774
  %v791 = vadd.f32 %v720, %v775
  %v792 = vadd.f32 %v721, %v776
  %v793 = vadd.f32 %v722, %v777
  %v794 = vadd.f32 %v723, %v778
  %v795 = vadd.f32 %v724, %v779
  %v796 = vadd.f32 %v725, %v780
  %v797 = vadd.f32 %v726, %v781
  %v798 = vadd.f32 %v727, %v782
  %v799 = vadd.f32 %v728, %v783
  %v800 = vadd.f32 %v729, %v784
  %v801 = vadd.f32 %v730, %v785
  %v802 = vadd.f32 %v731, %v786
  %v803 = vadd.f32 %v732, %v787
  %v804 = vadd.f32 %v733, %v788
  %s805 = scalar_lea.vmem %s0, 35
  %v806 = vld [vmem:[%s805] ss:$8 sm:$0xf]
  %807 = vset.pattern.permute.xlu0 11
  %808 = vperm.xlu0 %807, %v17
  %v809 = vpop.permute.xlu0 %808
  %811 = vset.pattern.permute.xlu0 11
  %812 = vperm.xlu0 %811, %v18
  %v813 = vpop.permute.xlu0 %812
  %815 = vset.pattern.permute.xlu0 11
  %816 = vperm.xlu0 %815, %v19
  %v817 = vpop.permute.xlu0 %816
  %819 = vset.pattern.permute.xlu0 11
  %820 = vperm.xlu0 %819, %v20
  %v821 = vpop.permute.xlu0 %820
  %v824 = vlaneseq
  %v825 = vshrl.u32 %v824, 7
  %v826 = vsub.s32 0, %v825
  %v827 = vrot.slane %v806, %v826
  %v828 = vlaneseq
  %v829 = vshrl.u32 %v828, 7
  %v830 = vsub.s32 1, %v829
  %v831 = vrot.slane %v806, %v830
  %v832 = vlaneseq
  %v833 = vshrl.u32 %v832, 7
  %v834 = vsub.s32 2, %v833
  %v835 = vrot.slane %v806, %v834
  %v836 = vlaneseq
  %v837 = vshrl.u32 %v836, 7
  %v838 = vsub.s32 3, %v837
  %v839 = vrot.slane %v806, %v838
  %v844 = vmul.f32 %v809, %v827
  %v845 = vmul.f32 %v809, %v831
  %v846 = vmul.f32 %v809, %v835
  %v847 = vmul.f32 %v809, %v839
  %v848 = vmul.f32 %v813, %v827
  %v849 = vmul.f32 %v813, %v831
  %v850 = vmul.f32 %v813, %v835
  %v851 = vmul.f32 %v813, %v839
  %v852 = vmul.f32 %v817, %v827
  %v853 = vmul.f32 %v817, %v831
  %v854 = vmul.f32 %v817, %v835
  %v855 = vmul.f32 %v817, %v839
  %v856 = vmul.f32 %v821, %v827
  %v857 = vmul.f32 %v821, %v831
  %v858 = vmul.f32 %v821, %v835
  %v859 = vmul.f32 %v821, %v839
  %v860 = vadd.f32 %v789, %v844
  %v861 = vadd.f32 %v790, %v845
  %v862 = vadd.f32 %v791, %v846
  %v863 = vadd.f32 %v792, %v847
  %v864 = vadd.f32 %v793, %v848
  %v865 = vadd.f32 %v794, %v849
  %v866 = vadd.f32 %v795, %v850
  %v867 = vadd.f32 %v796, %v851
  %v868 = vadd.f32 %v797, %v852
  %v869 = vadd.f32 %v798, %v853
  %v870 = vadd.f32 %v799, %v854
  %v871 = vadd.f32 %v800, %v855
  %v872 = vadd.f32 %v801, %v856
  %v873 = vadd.f32 %v802, %v857
  %v874 = vadd.f32 %v803, %v858
  %v875 = vadd.f32 %v804, %v859
  %s876 = scalar_lea.vmem %s0, 36
  %v877 = vld [vmem:[%s876] ss:$8 sm:$0xf]
  %878 = vset.pattern.permute.xlu0 12
  %879 = vperm.xlu0 %878, %v17
  %v880 = vpop.permute.xlu0 %879
  %882 = vset.pattern.permute.xlu0 12
  %883 = vperm.xlu0 %882, %v18
  %v884 = vpop.permute.xlu0 %883
  %886 = vset.pattern.permute.xlu0 12
  %887 = vperm.xlu0 %886, %v19
  %v888 = vpop.permute.xlu0 %887
  %890 = vset.pattern.permute.xlu0 12
  %891 = vperm.xlu0 %890, %v20
  %v892 = vpop.permute.xlu0 %891
  %v895 = vlaneseq
  %v896 = vshrl.u32 %v895, 7
  %v897 = vsub.s32 0, %v896
  %v898 = vrot.slane %v877, %v897
  %v899 = vlaneseq
  %v900 = vshrl.u32 %v899, 7
  %v901 = vsub.s32 1, %v900
  %v902 = vrot.slane %v877, %v901
  %v903 = vlaneseq
  %v904 = vshrl.u32 %v903, 7
  %v905 = vsub.s32 2, %v904
  %v906 = vrot.slane %v877, %v905
  %v907 = vlaneseq
  %v908 = vshrl.u32 %v907, 7
  %v909 = vsub.s32 3, %v908
  %v910 = vrot.slane %v877, %v909
  %v915 = vmul.f32 %v880, %v898
  %v916 = vmul.f32 %v880, %v902
  %v917 = vmul.f32 %v880, %v906
  %v918 = vmul.f32 %v880, %v910
  %v919 = vmul.f32 %v884, %v898
  %v920 = vmul.f32 %v884, %v902
  %v921 = vmul.f32 %v884, %v906
  %v922 = vmul.f32 %v884, %v910
  %v923 = vmul.f32 %v888, %v898
  %v924 = vmul.f32 %v888, %v902
  %v925 = vmul.f32 %v888, %v906
  %v926 = vmul.f32 %v888, %v910
  %v927 = vmul.f32 %v892, %v898
  %v928 = vmul.f32 %v892, %v902
  %v929 = vmul.f32 %v892, %v906
  %v930 = vmul.f32 %v892, %v910
  %v931 = vadd.f32 %v860, %v915
  %v932 = vadd.f32 %v861, %v916
  %v933 = vadd.f32 %v862, %v917
  %v934 = vadd.f32 %v863, %v918
  %v935 = vadd.f32 %v864, %v919
  %v936 = vadd.f32 %v865, %v920
  %v937 = vadd.f32 %v866, %v921
  %v938 = vadd.f32 %v867, %v922
  %v939 = vadd.f32 %v868, %v923
  %v940 = vadd.f32 %v869, %v924
  %v941 = vadd.f32 %v870, %v925
  %v942 = vadd.f32 %v871, %v926
  %v943 = vadd.f32 %v872, %v927
  %v944 = vadd.f32 %v873, %v928
  %v945 = vadd.f32 %v874, %v929
  %v946 = vadd.f32 %v875, %v930
  %s947 = scalar_lea.vmem %s0, 37
  %v948 = vld [vmem:[%s947] ss:$8 sm:$0xf]
  %949 = vset.pattern.permute.xlu0 13
  %950 = vperm.xlu0 %949, %v17
  %v951 = vpop.permute.xlu0 %950
  %953 = vset.pattern.permute.xlu0 13
  %954 = vperm.xlu0 %953, %v18
  %v955 = vpop.permute.xlu0 %954
  %957 = vset.pattern.permute.xlu0 13
  %958 = vperm.xlu0 %957, %v19
  %v959 = vpop.permute.xlu0 %958
  %961 = vset.pattern.permute.xlu0 13
  %962 = vperm.xlu0 %961, %v20
  %v963 = vpop.permute.xlu0 %962
  %v966 = vlaneseq
  %v967 = vshrl.u32 %v966, 7
  %v968 = vsub.s32 0, %v967
  %v969 = vrot.slane %v948, %v968
  %v970 = vlaneseq
  %v971 = vshrl.u32 %v970, 7
  %v972 = vsub.s32 1, %v971
  %v973 = vrot.slane %v948, %v972
  %v974 = vlaneseq
  %v975 = vshrl.u32 %v974, 7
  %v976 = vsub.s32 2, %v975
  %v977 = vrot.slane %v948, %v976
  %v978 = vlaneseq
  %v979 = vshrl.u32 %v978, 7
  %v980 = vsub.s32 3, %v979
  %v981 = vrot.slane %v948, %v980
  %v986 = vmul.f32 %v951, %v969
  %v987 = vmul.f32 %v951, %v973
  %v988 = vmul.f32 %v951, %v977
  %v989 = vmul.f32 %v951, %v981
  %v990 = vmul.f32 %v955, %v969
  %v991 = vmul.f32 %v955, %v973
  %v992 = vmul.f32 %v955, %v977
  %v993 = vmul.f32 %v955, %v981
  %v994 = vmul.f32 %v959, %v969
  %v995 = vmul.f32 %v959, %v973
  %v996 = vmul.f32 %v959, %v977
  %v997 = vmul.f32 %v959, %v981
  %v998 = vmul.f32 %v963, %v969
  %v999 = vmul.f32 %v963, %v973
  %v1000 = vmul.f32 %v963, %v977
  %v1001 = vmul.f32 %v963, %v981
  %v1002 = vadd.f32 %v931, %v986
  %v1003 = vadd.f32 %v932, %v987
  %v1004 = vadd.f32 %v933, %v988
  %v1005 = vadd.f32 %v934, %v989
  %v1006 = vadd.f32 %v935, %v990
  %v1007 = vadd.f32 %v936, %v991
  %v1008 = vadd.f32 %v937, %v992
  %v1009 = vadd.f32 %v938, %v993
  %v1010 = vadd.f32 %v939, %v994
  %v1011 = vadd.f32 %v940, %v995
  %v1012 = vadd.f32 %v941, %v996
  %v1013 = vadd.f32 %v942, %v997
  %v1014 = vadd.f32 %v943, %v998
  %v1015 = vadd.f32 %v944, %v999
  %v1016 = vadd.f32 %v945, %v1000
  %v1017 = vadd.f32 %v946, %v1001
  %s1018 = scalar_lea.vmem %s0, 38
  %v1019 = vld [vmem:[%s1018] ss:$8 sm:$0xf]
  %1020 = vset.pattern.permute.xlu0 14
  %1021 = vperm.xlu0 %1020, %v17
  %v1022 = vpop.permute.xlu0 %1021
  %1024 = vset.pattern.permute.xlu0 14
  %1025 = vperm.xlu0 %1024, %v18
  %v1026 = vpop.permute.xlu0 %1025
  %1028 = vset.pattern.permute.xlu0 14
  %1029 = vperm.xlu0 %1028, %v19
  %v1030 = vpop.permute.xlu0 %1029
  %1032 = vset.pattern.permute.xlu0 14
  %1033 = vperm.xlu0 %1032, %v20
  %v1034 = vpop.permute.xlu0 %1033
  %v1037 = vlaneseq
  %v1038 = vshrl.u32 %v1037, 7
  %v1039 = vsub.s32 0, %v1038
  %v1040 = vrot.slane %v1019, %v1039
  %v1041 = vlaneseq
  %v1042 = vshrl.u32 %v1041, 7
  %v1043 = vsub.s32 1, %v1042
  %v1044 = vrot.slane %v1019, %v1043
  %v1045 = vlaneseq
  %v1046 = vshrl.u32 %v1045, 7
  %v1047 = vsub.s32 2, %v1046
  %v1048 = vrot.slane %v1019, %v1047
  %v1049 = vlaneseq
  %v1050 = vshrl.u32 %v1049, 7
  %v1051 = vsub.s32 3, %v1050
  %v1052 = vrot.slane %v1019, %v1051
  %v1057 = vmul.f32 %v1022, %v1040
  %v1058 = vmul.f32 %v1022, %v1044
  %v1059 = vmul.f32 %v1022, %v1048
  %v1060 = vmul.f32 %v1022, %v1052
  %v1061 = vmul.f32 %v1026, %v1040
  %v1062 = vmul.f32 %v1026, %v1044
  %v1063 = vmul.f32 %v1026, %v1048
  %v1064 = vmul.f32 %v1026, %v1052
  %v1065 = vmul.f32 %v1030, %v1040
  %v1066 = vmul.f32 %v1030, %v1044
  %v1067 = vmul.f32 %v1030, %v1048
  %v1068 = vmul.f32 %v1030, %v1052
  %v1069 = vmul.f32 %v1034, %v1040
  %v1070 = vmul.f32 %v1034, %v1044
  %v1071 = vmul.f32 %v1034, %v1048
  %v1072 = vmul.f32 %v1034, %v1052
  %v1073 = vadd.f32 %v1002, %v1057
  %v1074 = vadd.f32 %v1003, %v1058
  %v1075 = vadd.f32 %v1004, %v1059
  %v1076 = vadd.f32 %v1005, %v1060
  %v1077 = vadd.f32 %v1006, %v1061
  %v1078 = vadd.f32 %v1007, %v1062
  %v1079 = vadd.f32 %v1008, %v1063
  %v1080 = vadd.f32 %v1009, %v1064
  %v1081 = vadd.f32 %v1010, %v1065
  %v1082 = vadd.f32 %v1011, %v1066
  %v1083 = vadd.f32 %v1012, %v1067
  %v1084 = vadd.f32 %v1013, %v1068
  %v1085 = vadd.f32 %v1014, %v1069
  %v1086 = vadd.f32 %v1015, %v1070
  %v1087 = vadd.f32 %v1016, %v1071
  %v1088 = vadd.f32 %v1017, %v1072
  %s1089 = scalar_lea.vmem %s0, 39
  %v1090 = vld [vmem:[%s1089] ss:$8 sm:$0xf]
  %1091 = vset.pattern.permute.xlu0 15
  %1092 = vperm.xlu0 %1091, %v17
  %v1093 = vpop.permute.xlu0 %1092
  %1095 = vset.pattern.permute.xlu0 15
  %1096 = vperm.xlu0 %1095, %v18
  %v1097 = vpop.permute.xlu0 %1096
  %1099 = vset.pattern.permute.xlu0 15
  %1100 = vperm.xlu0 %1099, %v19
  %v1101 = vpop.permute.xlu0 %1100
  %1103 = vset.pattern.permute.xlu0 15
  %1104 = vperm.xlu0 %1103, %v20
  %v1105 = vpop.permute.xlu0 %1104
  %v1108 = vlaneseq
  %v1109 = vshrl.u32 %v1108, 7
  %v1110 = vsub.s32 0, %v1109
  %v1111 = vrot.slane %v1090, %v1110
  %v1112 = vlaneseq
  %v1113 = vshrl.u32 %v1112, 7
  %v1114 = vsub.s32 1, %v1113
  %v1115 = vrot.slane %v1090, %v1114
  %v1116 = vlaneseq
  %v1117 = vshrl.u32 %v1116, 7
  %v1118 = vsub.s32 2, %v1117
  %v1119 = vrot.slane %v1090, %v1118
  %v1120 = vlaneseq
  %v1121 = vshrl.u32 %v1120, 7
  %v1122 = vsub.s32 3, %v1121
  %v1123 = vrot.slane %v1090, %v1122
  %v1128 = vmul.f32 %v1093, %v1111
  %v1129 = vmul.f32 %v1093, %v1115
  %v1130 = vmul.f32 %v1093, %v1119
  %v1131 = vmul.f32 %v1093, %v1123
  %v1132 = vmul.f32 %v1097, %v1111
  %v1133 = vmul.f32 %v1097, %v1115
  %v1134 = vmul.f32 %v1097, %v1119
  %v1135 = vmul.f32 %v1097, %v1123
  %v1136 = vmul.f32 %v1101, %v1111
  %v1137 = vmul.f32 %v1101, %v1115
  %v1138 = vmul.f32 %v1101, %v1119
  %v1139 = vmul.f32 %v1101, %v1123
  %v1140 = vmul.f32 %v1105, %v1111
  %v1141 = vmul.f32 %v1105, %v1115
  %v1142 = vmul.f32 %v1105, %v1119
  %v1143 = vmul.f32 %v1105, %v1123
  %v1144 = vadd.f32 %v1073, %v1128
  %v1145 = vadd.f32 %v1074, %v1129
  %v1146 = vadd.f32 %v1075, %v1130
  %v1147 = vadd.f32 %v1076, %v1131
  %v1148 = vadd.f32 %v1077, %v1132
  %v1149 = vadd.f32 %v1078, %v1133
  %v1150 = vadd.f32 %v1079, %v1134
  %v1151 = vadd.f32 %v1080, %v1135
  %v1152 = vadd.f32 %v1081, %v1136
  %v1153 = vadd.f32 %v1082, %v1137
  %v1154 = vadd.f32 %v1083, %v1138
  %v1155 = vadd.f32 %v1084, %v1139
  %v1156 = vadd.f32 %v1085, %v1140
  %v1157 = vadd.f32 %v1086, %v1141
  %v1158 = vadd.f32 %v1087, %v1142
  %v1159 = vadd.f32 %v1088, %v1143
  %s1160 = scalar_lea.vmem %s0, 64
  %v1161 = vld [vmem:[%s1160] ss:$8 sm:$0xf]
  %1162 = vset.pattern.permute.xlu0 16
  %1163 = vperm.xlu0 %1162, %v17
  %v1164 = vpop.permute.xlu0 %1163
  %1166 = vset.pattern.permute.xlu0 16
  %1167 = vperm.xlu0 %1166, %v18
  %v1168 = vpop.permute.xlu0 %1167
  %1170 = vset.pattern.permute.xlu0 16
  %1171 = vperm.xlu0 %1170, %v19
  %v1172 = vpop.permute.xlu0 %1171
  %1174 = vset.pattern.permute.xlu0 16
  %1175 = vperm.xlu0 %1174, %v20
  %v1176 = vpop.permute.xlu0 %1175
  %v1179 = vlaneseq
  %v1180 = vshrl.u32 %v1179, 7
  %v1181 = vsub.s32 0, %v1180
  %v1182 = vrot.slane %v1161, %v1181
  %v1183 = vlaneseq
  %v1184 = vshrl.u32 %v1183, 7
  %v1185 = vsub.s32 1, %v1184
  %v1186 = vrot.slane %v1161, %v1185
  %v1187 = vlaneseq
  %v1188 = vshrl.u32 %v1187, 7
  %v1189 = vsub.s32 2, %v1188
  %v1190 = vrot.slane %v1161, %v1189
  %v1191 = vlaneseq
  %v1192 = vshrl.u32 %v1191, 7
  %v1193 = vsub.s32 3, %v1192
  %v1194 = vrot.slane %v1161, %v1193
  %v1199 = vmul.f32 %v1164, %v1182
  %v1200 = vmul.f32 %v1164, %v1186
  %v1201 = vmul.f32 %v1164, %v1190
  %v1202 = vmul.f32 %v1164, %v1194
  %v1203 = vmul.f32 %v1168, %v1182
  %v1204 = vmul.f32 %v1168, %v1186
  %v1205 = vmul.f32 %v1168, %v1190
  %v1206 = vmul.f32 %v1168, %v1194
  %v1207 = vmul.f32 %v1172, %v1182
  %v1208 = vmul.f32 %v1172, %v1186
  %v1209 = vmul.f32 %v1172, %v1190
  %v1210 = vmul.f32 %v1172, %v1194
  %v1211 = vmul.f32 %v1176, %v1182
  %v1212 = vmul.f32 %v1176, %v1186
  %v1213 = vmul.f32 %v1176, %v1190
  %v1214 = vmul.f32 %v1176, %v1194
  %v1215 = vadd.f32 %v1144, %v1199
  %v1216 = vadd.f32 %v1145, %v1200
  %v1217 = vadd.f32 %v1146, %v1201
  %v1218 = vadd.f32 %v1147, %v1202
  %v1219 = vadd.f32 %v1148, %v1203
  %v1220 = vadd.f32 %v1149, %v1204
  %v1221 = vadd.f32 %v1150, %v1205
  %v1222 = vadd.f32 %v1151, %v1206
  %v1223 = vadd.f32 %v1152, %v1207
  %v1224 = vadd.f32 %v1153, %v1208
  %v1225 = vadd.f32 %v1154, %v1209
  %v1226 = vadd.f32 %v1155, %v1210
  %v1227 = vadd.f32 %v1156, %v1211
  %v1228 = vadd.f32 %v1157, %v1212
  %v1229 = vadd.f32 %v1158, %v1213
  %v1230 = vadd.f32 %v1159, %v1214
  %s1231 = scalar_lea.vmem %s0, 65
  %v1232 = vld [vmem:[%s1231] ss:$8 sm:$0xf]
  %1233 = vset.pattern.permute.xlu0 17
  %1234 = vperm.xlu0 %1233, %v17
  %v1235 = vpop.permute.xlu0 %1234
  %1237 = vset.pattern.permute.xlu0 17
  %1238 = vperm.xlu0 %1237, %v18
  %v1239 = vpop.permute.xlu0 %1238
  %1241 = vset.pattern.permute.xlu0 17
  %1242 = vperm.xlu0 %1241, %v19
  %v1243 = vpop.permute.xlu0 %1242
  %1245 = vset.pattern.permute.xlu0 17
  %1246 = vperm.xlu0 %1245, %v20
  %v1247 = vpop.permute.xlu0 %1246
  %v1250 = vlaneseq
  %v1251 = vshrl.u32 %v1250, 7
  %v1252 = vsub.s32 0, %v1251
  %v1253 = vrot.slane %v1232, %v1252
  %v1254 = vlaneseq
  %v1255 = vshrl.u32 %v1254, 7
  %v1256 = vsub.s32 1, %v1255
  %v1257 = vrot.slane %v1232, %v1256
  %v1258 = vlaneseq
  %v1259 = vshrl.u32 %v1258, 7
  %v1260 = vsub.s32 2, %v1259
  %v1261 = vrot.slane %v1232, %v1260
  %v1262 = vlaneseq
  %v1263 = vshrl.u32 %v1262, 7
  %v1264 = vsub.s32 3, %v1263
  %v1265 = vrot.slane %v1232, %v1264
  %v1270 = vmul.f32 %v1235, %v1253
  %v1271 = vmul.f32 %v1235, %v1257
  %v1272 = vmul.f32 %v1235, %v1261
  %v1273 = vmul.f32 %v1235, %v1265
  %v1274 = vmul.f32 %v1239, %v1253
  %v1275 = vmul.f32 %v1239, %v1257
  %v1276 = vmul.f32 %v1239, %v1261
  %v1277 = vmul.f32 %v1239, %v1265
  %v1278 = vmul.f32 %v1243, %v1253
  %v1279 = vmul.f32 %v1243, %v1257
  %v1280 = vmul.f32 %v1243, %v1261
  %v1281 = vmul.f32 %v1243, %v1265
  %v1282 = vmul.f32 %v1247, %v1253
  %v1283 = vmul.f32 %v1247, %v1257
  %v1284 = vmul.f32 %v1247, %v1261
  %v1285 = vmul.f32 %v1247, %v1265
  %v1286 = vadd.f32 %v1215, %v1270
  %v1287 = vadd.f32 %v1216, %v1271
  %v1288 = vadd.f32 %v1217, %v1272
  %v1289 = vadd.f32 %v1218, %v1273
  %v1290 = vadd.f32 %v1219, %v1274
  %v1291 = vadd.f32 %v1220, %v1275
  %v1292 = vadd.f32 %v1221, %v1276
  %v1293 = vadd.f32 %v1222, %v1277
  %v1294 = vadd.f32 %v1223, %v1278
  %v1295 = vadd.f32 %v1224, %v1279
  %v1296 = vadd.f32 %v1225, %v1280
  %v1297 = vadd.f32 %v1226, %v1281
  %v1298 = vadd.f32 %v1227, %v1282
  %v1299 = vadd.f32 %v1228, %v1283
  %v1300 = vadd.f32 %v1229, %v1284
  %v1301 = vadd.f32 %v1230, %v1285
  %s1302 = scalar_lea.vmem %s0, 66
  %v1303 = vld [vmem:[%s1302] ss:$8 sm:$0xf]
  %1304 = vset.pattern.permute.xlu0 18
  %1305 = vperm.xlu0 %1304, %v17
  %v1306 = vpop.permute.xlu0 %1305
  %1308 = vset.pattern.permute.xlu0 18
  %1309 = vperm.xlu0 %1308, %v18
  %v1310 = vpop.permute.xlu0 %1309
  %1312 = vset.pattern.permute.xlu0 18
  %1313 = vperm.xlu0 %1312, %v19
  %v1314 = vpop.permute.xlu0 %1313
  %1316 = vset.pattern.permute.xlu0 18
  %1317 = vperm.xlu0 %1316, %v20
  %v1318 = vpop.permute.xlu0 %1317
  %v1321 = vlaneseq
  %v1322 = vshrl.u32 %v1321, 7
  %v1323 = vsub.s32 0, %v1322
  %v1324 = vrot.slane %v1303, %v1323
  %v1325 = vlaneseq
  %v1326 = vshrl.u32 %v1325, 7
  %v1327 = vsub.s32 1, %v1326
  %v1328 = vrot.slane %v1303, %v1327
  %v1329 = vlaneseq
  %v1330 = vshrl.u32 %v1329, 7
  %v1331 = vsub.s32 2, %v1330
  %v1332 = vrot.slane %v1303, %v1331
  %v1333 = vlaneseq
  %v1334 = vshrl.u32 %v1333, 7
  %v1335 = vsub.s32 3, %v1334
  %v1336 = vrot.slane %v1303, %v1335
  %v1341 = vmul.f32 %v1306, %v1324
  %v1342 = vmul.f32 %v1306, %v1328
  %v1343 = vmul.f32 %v1306, %v1332
  %v1344 = vmul.f32 %v1306, %v1336
  %v1345 = vmul.f32 %v1310, %v1324
  %v1346 = vmul.f32 %v1310, %v1328
  %v1347 = vmul.f32 %v1310, %v1332
  %v1348 = vmul.f32 %v1310, %v1336
  %v1349 = vmul.f32 %v1314, %v1324
  %v1350 = vmul.f32 %v1314, %v1328
  %v1351 = vmul.f32 %v1314, %v1332
  %v1352 = vmul.f32 %v1314, %v1336
  %v1353 = vmul.f32 %v1318, %v1324
  %v1354 = vmul.f32 %v1318, %v1328
  %v1355 = vmul.f32 %v1318, %v1332
  %v1356 = vmul.f32 %v1318, %v1336
  %v1357 = vadd.f32 %v1286, %v1341
  %v1358 = vadd.f32 %v1287, %v1342
  %v1359 = vadd.f32 %v1288, %v1343
  %v1360 = vadd.f32 %v1289, %v1344
  %v1361 = vadd.f32 %v1290, %v1345
  %v1362 = vadd.f32 %v1291, %v1346
  %v1363 = vadd.f32 %v1292, %v1347
  %v1364 = vadd.f32 %v1293, %v1348
  %v1365 = vadd.f32 %v1294, %v1349
  %v1366 = vadd.f32 %v1295, %v1350
  %v1367 = vadd.f32 %v1296, %v1351
  %v1368 = vadd.f32 %v1297, %v1352
  %v1369 = vadd.f32 %v1298, %v1353
  %v1370 = vadd.f32 %v1299, %v1354
  %v1371 = vadd.f32 %v1300, %v1355
  %v1372 = vadd.f32 %v1301, %v1356
  %s1373 = scalar_lea.vmem %s0, 67
  %v1374 = vld [vmem:[%s1373] ss:$8 sm:$0xf]
  %1375 = vset.pattern.permute.xlu0 19
  %1376 = vperm.xlu0 %1375, %v17
  %v1377 = vpop.permute.xlu0 %1376
  %1379 = vset.pattern.permute.xlu0 19
  %1380 = vperm.xlu0 %1379, %v18
  %v1381 = vpop.permute.xlu0 %1380
  %1383 = vset.pattern.permute.xlu0 19
  %1384 = vperm.xlu0 %1383, %v19
  %v1385 = vpop.permute.xlu0 %1384
  %1387 = vset.pattern.permute.xlu0 19
  %1388 = vperm.xlu0 %1387, %v20
  %v1389 = vpop.permute.xlu0 %1388
  %v1392 = vlaneseq
  %v1393 = vshrl.u32 %v1392, 7
  %v1394 = vsub.s32 0, %v1393
  %v1395 = vrot.slane %v1374, %v1394
  %v1396 = vlaneseq
  %v1397 = vshrl.u32 %v1396, 7
  %v1398 = vsub.s32 1, %v1397
  %v1399 = vrot.slane %v1374, %v1398
  %v1400 = vlaneseq
  %v1401 = vshrl.u32 %v1400, 7
  %v1402 = vsub.s32 2, %v1401
  %v1403 = vrot.slane %v1374, %v1402
  %v1404 = vlaneseq
  %v1405 = vshrl.u32 %v1404, 7
  %v1406 = vsub.s32 3, %v1405
  %v1407 = vrot.slane %v1374, %v1406
  %v1412 = vmul.f32 %v1377, %v1395
  %v1413 = vmul.f32 %v1377, %v1399
  %v1414 = vmul.f32 %v1377, %v1403
  %v1415 = vmul.f32 %v1377, %v1407
  %v1416 = vmul.f32 %v1381, %v1395
  %v1417 = vmul.f32 %v1381, %v1399
  %v1418 = vmul.f32 %v1381, %v1403
  %v1419 = vmul.f32 %v1381, %v1407
  %v1420 = vmul.f32 %v1385, %v1395
  %v1421 = vmul.f32 %v1385, %v1399
  %v1422 = vmul.f32 %v1385, %v1403
  %v1423 = vmul.f32 %v1385, %v1407
  %v1424 = vmul.f32 %v1389, %v1395
  %v1425 = vmul.f32 %v1389, %v1399
  %v1426 = vmul.f32 %v1389, %v1403
  %v1427 = vmul.f32 %v1389, %v1407
  %v1428 = vadd.f32 %v1357, %v1412
  %v1429 = vadd.f32 %v1358, %v1413
  %v1430 = vadd.f32 %v1359, %v1414
  %v1431 = vadd.f32 %v1360, %v1415
  %v1432 = vadd.f32 %v1361, %v1416
  %v1433 = vadd.f32 %v1362, %v1417
  %v1434 = vadd.f32 %v1363, %v1418
  %v1435 = vadd.f32 %v1364, %v1419
  %v1436 = vadd.f32 %v1365, %v1420
  %v1437 = vadd.f32 %v1366, %v1421
  %v1438 = vadd.f32 %v1367, %v1422
  %v1439 = vadd.f32 %v1368, %v1423
  %v1440 = vadd.f32 %v1369, %v1424
  %v1441 = vadd.f32 %v1370, %v1425
  %v1442 = vadd.f32 %v1371, %v1426
  %v1443 = vadd.f32 %v1372, %v1427
  %s1444 = scalar_lea.vmem %s0, 68
  %v1445 = vld [vmem:[%s1444] ss:$8 sm:$0xf]
  %1446 = vset.pattern.permute.xlu0 20
  %1447 = vperm.xlu0 %1446, %v17
  %v1448 = vpop.permute.xlu0 %1447
  %1450 = vset.pattern.permute.xlu0 20
  %1451 = vperm.xlu0 %1450, %v18
  %v1452 = vpop.permute.xlu0 %1451
  %1454 = vset.pattern.permute.xlu0 20
  %1455 = vperm.xlu0 %1454, %v19
  %v1456 = vpop.permute.xlu0 %1455
  %1458 = vset.pattern.permute.xlu0 20
  %1459 = vperm.xlu0 %1458, %v20
  %v1460 = vpop.permute.xlu0 %1459
  %v1463 = vlaneseq
  %v1464 = vshrl.u32 %v1463, 7
  %v1465 = vsub.s32 0, %v1464
  %v1466 = vrot.slane %v1445, %v1465
  %v1467 = vlaneseq
  %v1468 = vshrl.u32 %v1467, 7
  %v1469 = vsub.s32 1, %v1468
  %v1470 = vrot.slane %v1445, %v1469
  %v1471 = vlaneseq
  %v1472 = vshrl.u32 %v1471, 7
  %v1473 = vsub.s32 2, %v1472
  %v1474 = vrot.slane %v1445, %v1473
  %v1475 = vlaneseq
  %v1476 = vshrl.u32 %v1475, 7
  %v1477 = vsub.s32 3, %v1476
  %v1478 = vrot.slane %v1445, %v1477
  %v1483 = vmul.f32 %v1448, %v1466
  %v1484 = vmul.f32 %v1448, %v1470
  %v1485 = vmul.f32 %v1448, %v1474
  %v1486 = vmul.f32 %v1448, %v1478
  %v1487 = vmul.f32 %v1452, %v1466
  %v1488 = vmul.f32 %v1452, %v1470
  %v1489 = vmul.f32 %v1452, %v1474
  %v1490 = vmul.f32 %v1452, %v1478
  %v1491 = vmul.f32 %v1456, %v1466
  %v1492 = vmul.f32 %v1456, %v1470
  %v1493 = vmul.f32 %v1456, %v1474
  %v1494 = vmul.f32 %v1456, %v1478
  %v1495 = vmul.f32 %v1460, %v1466
  %v1496 = vmul.f32 %v1460, %v1470
  %v1497 = vmul.f32 %v1460, %v1474
  %v1498 = vmul.f32 %v1460, %v1478
  %v1499 = vadd.f32 %v1428, %v1483
  %v1500 = vadd.f32 %v1429, %v1484
  %v1501 = vadd.f32 %v1430, %v1485
  %v1502 = vadd.f32 %v1431, %v1486
  %v1503 = vadd.f32 %v1432, %v1487
  %v1504 = vadd.f32 %v1433, %v1488
  %v1505 = vadd.f32 %v1434, %v1489
  %v1506 = vadd.f32 %v1435, %v1490
  %v1507 = vadd.f32 %v1436, %v1491
  %v1508 = vadd.f32 %v1437, %v1492
  %v1509 = vadd.f32 %v1438, %v1493
  %v1510 = vadd.f32 %v1439, %v1494
  %v1511 = vadd.f32 %v1440, %v1495
  %v1512 = vadd.f32 %v1441, %v1496
  %v1513 = vadd.f32 %v1442, %v1497
  %v1514 = vadd.f32 %v1443, %v1498
  %s1515 = scalar_lea.vmem %s0, 69
  %v1516 = vld [vmem:[%s1515] ss:$8 sm:$0xf]
  %1517 = vset.pattern.permute.xlu0 21
  %1518 = vperm.xlu0 %1517, %v17
  %v1519 = vpop.permute.xlu0 %1518
  %1521 = vset.pattern.permute.xlu0 21
  %1522 = vperm.xlu0 %1521, %v18
  %v1523 = vpop.permute.xlu0 %1522
  %1525 = vset.pattern.permute.xlu0 21
  %1526 = vperm.xlu0 %1525, %v19
  %v1527 = vpop.permute.xlu0 %1526
  %1529 = vset.pattern.permute.xlu0 21
  %1530 = vperm.xlu0 %1529, %v20
  %v1531 = vpop.permute.xlu0 %1530
  %v1534 = vlaneseq
  %v1535 = vshrl.u32 %v1534, 7
  %v1536 = vsub.s32 0, %v1535
  %v1537 = vrot.slane %v1516, %v1536
  %v1538 = vlaneseq
  %v1539 = vshrl.u32 %v1538, 7
  %v1540 = vsub.s32 1, %v1539
  %v1541 = vrot.slane %v1516, %v1540
  %v1542 = vlaneseq
  %v1543 = vshrl.u32 %v1542, 7
  %v1544 = vsub.s32 2, %v1543
  %v1545 = vrot.slane %v1516, %v1544
  %v1546 = vlaneseq
  %v1547 = vshrl.u32 %v1546, 7
  %v1548 = vsub.s32 3, %v1547
  %v1549 = vrot.slane %v1516, %v1548
  %v1554 = vmul.f32 %v1519, %v1537
  %v1555 = vmul.f32 %v1519, %v1541
  %v1556 = vmul.f32 %v1519, %v1545
  %v1557 = vmul.f32 %v1519, %v1549
  %v1558 = vmul.f32 %v1523, %v1537
  %v1559 = vmul.f32 %v1523, %v1541
  %v1560 = vmul.f32 %v1523, %v1545
  %v1561 = vmul.f32 %v1523, %v1549
  %v1562 = vmul.f32 %v1527, %v1537
  %v1563 = vmul.f32 %v1527, %v1541
  %v1564 = vmul.f32 %v1527, %v1545
  %v1565 = vmul.f32 %v1527, %v1549
  %v1566 = vmul.f32 %v1531, %v1537
  %v1567 = vmul.f32 %v1531, %v1541
  %v1568 = vmul.f32 %v1531, %v1545
  %v1569 = vmul.f32 %v1531, %v1549
  %v1570 = vadd.f32 %v1499, %v1554
  %v1571 = vadd.f32 %v1500, %v1555
  %v1572 = vadd.f32 %v1501, %v1556
  %v1573 = vadd.f32 %v1502, %v1557
  %v1574 = vadd.f32 %v1503, %v1558
  %v1575 = vadd.f32 %v1504, %v1559
  %v1576 = vadd.f32 %v1505, %v1560
  %v1577 = vadd.f32 %v1506, %v1561
  %v1578 = vadd.f32 %v1507, %v1562
  %v1579 = vadd.f32 %v1508, %v1563
  %v1580 = vadd.f32 %v1509, %v1564
  %v1581 = vadd.f32 %v1510, %v1565
  %v1582 = vadd.f32 %v1511, %v1566
  %v1583 = vadd.f32 %v1512, %v1567
  %v1584 = vadd.f32 %v1513, %v1568
  %v1585 = vadd.f32 %v1514, %v1569
  %s1586 = scalar_lea.vmem %s0, 70
  %v1587 = vld [vmem:[%s1586] ss:$8 sm:$0xf]
  %1588 = vset.pattern.permute.xlu0 22
  %1589 = vperm.xlu0 %1588, %v17
  %v1590 = vpop.permute.xlu0 %1589
  %1592 = vset.pattern.permute.xlu0 22
  %1593 = vperm.xlu0 %1592, %v18
  %v1594 = vpop.permute.xlu0 %1593
  %1596 = vset.pattern.permute.xlu0 22
  %1597 = vperm.xlu0 %1596, %v19
  %v1598 = vpop.permute.xlu0 %1597
  %1600 = vset.pattern.permute.xlu0 22
  %1601 = vperm.xlu0 %1600, %v20
  %v1602 = vpop.permute.xlu0 %1601
  %v1605 = vlaneseq
  %v1606 = vshrl.u32 %v1605, 7
  %v1607 = vsub.s32 0, %v1606
  %v1608 = vrot.slane %v1587, %v1607
  %v1609 = vlaneseq
  %v1610 = vshrl.u32 %v1609, 7
  %v1611 = vsub.s32 1, %v1610
  %v1612 = vrot.slane %v1587, %v1611
  %v1613 = vlaneseq
  %v1614 = vshrl.u32 %v1613, 7
  %v1615 = vsub.s32 2, %v1614
  %v1616 = vrot.slane %v1587, %v1615
  %v1617 = vlaneseq
  %v1618 = vshrl.u32 %v1617, 7
  %v1619 = vsub.s32 3, %v1618
  %v1620 = vrot.slane %v1587, %v1619
  %v1625 = vmul.f32 %v1590, %v1608
  %v1626 = vmul.f32 %v1590, %v1612
  %v1627 = vmul.f32 %v1590, %v1616
  %v1628 = vmul.f32 %v1590, %v1620
  %v1629 = vmul.f32 %v1594, %v1608
  %v1630 = vmul.f32 %v1594, %v1612
  %v1631 = vmul.f32 %v1594, %v1616
  %v1632 = vmul.f32 %v1594, %v1620
  %v1633 = vmul.f32 %v1598, %v1608
  %v1634 = vmul.f32 %v1598, %v1612
  %v1635 = vmul.f32 %v1598, %v1616
  %v1636 = vmul.f32 %v1598, %v1620
  %v1637 = vmul.f32 %v1602, %v1608
  %v1638 = vmul.f32 %v1602, %v1612
  %v1639 = vmul.f32 %v1602, %v1616
  %v1640 = vmul.f32 %v1602, %v1620
  %v1641 = vadd.f32 %v1570, %v1625
  %v1642 = vadd.f32 %v1571, %v1626
  %v1643 = vadd.f32 %v1572, %v1627
  %v1644 = vadd.f32 %v1573, %v1628
  %v1645 = vadd.f32 %v1574, %v1629
  %v1646 = vadd.f32 %v1575, %v1630
  %v1647 = vadd.f32 %v1576, %v1631
  %v1648 = vadd.f32 %v1577, %v1632
  %v1649 = vadd.f32 %v1578, %v1633
  %v1650 = vadd.f32 %v1579, %v1634
  %v1651 = vadd.f32 %v1580, %v1635
  %v1652 = vadd.f32 %v1581, %v1636
  %v1653 = vadd.f32 %v1582, %v1637
  %v1654 = vadd.f32 %v1583, %v1638
  %v1655 = vadd.f32 %v1584, %v1639
  %v1656 = vadd.f32 %v1585, %v1640
  %s1657 = scalar_lea.vmem %s0, 71
  %v1658 = vld [vmem:[%s1657] ss:$8 sm:$0xf]
  %1659 = vset.pattern.permute.xlu0 23
  %1660 = vperm.xlu0 %1659, %v17
  %v1661 = vpop.permute.xlu0 %1660
  %1663 = vset.pattern.permute.xlu0 23
  %1664 = vperm.xlu0 %1663, %v18
  %v1665 = vpop.permute.xlu0 %1664
  %1667 = vset.pattern.permute.xlu0 23
  %1668 = vperm.xlu0 %1667, %v19
  %v1669 = vpop.permute.xlu0 %1668
  %1671 = vset.pattern.permute.xlu0 23
  %1672 = vperm.xlu0 %1671, %v20
  %v1673 = vpop.permute.xlu0 %1672
  %v1676 = vlaneseq
  %v1677 = vshrl.u32 %v1676, 7
  %v1678 = vsub.s32 0, %v1677
  %v1679 = vrot.slane %v1658, %v1678
  %v1680 = vlaneseq
  %v1681 = vshrl.u32 %v1680, 7
  %v1682 = vsub.s32 1, %v1681
  %v1683 = vrot.slane %v1658, %v1682
  %v1684 = vlaneseq
  %v1685 = vshrl.u32 %v1684, 7
  %v1686 = vsub.s32 2, %v1685
  %v1687 = vrot.slane %v1658, %v1686
  %v1688 = vlaneseq
  %v1689 = vshrl.u32 %v1688, 7
  %v1690 = vsub.s32 3, %v1689
  %v1691 = vrot.slane %v1658, %v1690
  %v1696 = vmul.f32 %v1661, %v1679
  %v1697 = vmul.f32 %v1661, %v1683
  %v1698 = vmul.f32 %v1661, %v1687
  %v1699 = vmul.f32 %v1661, %v1691
  %v1700 = vmul.f32 %v1665, %v1679
  %v1701 = vmul.f32 %v1665, %v1683
  %v1702 = vmul.f32 %v1665, %v1687
  %v1703 = vmul.f32 %v1665, %v1691
  %v1704 = vmul.f32 %v1669, %v1679
  %v1705 = vmul.f32 %v1669, %v1683
  %v1706 = vmul.f32 %v1669, %v1687
  %v1707 = vmul.f32 %v1669, %v1691
  %v1708 = vmul.f32 %v1673, %v1679
  %v1709 = vmul.f32 %v1673, %v1683
  %v1710 = vmul.f32 %v1673, %v1687
  %v1711 = vmul.f32 %v1673, %v1691
  %v1712 = vadd.f32 %v1641, %v1696
  %v1713 = vadd.f32 %v1642, %v1697
  %v1714 = vadd.f32 %v1643, %v1698
  %v1715 = vadd.f32 %v1644, %v1699
  %v1716 = vadd.f32 %v1645, %v1700
  %v1717 = vadd.f32 %v1646, %v1701
  %v1718 = vadd.f32 %v1647, %v1702
  %v1719 = vadd.f32 %v1648, %v1703
  %v1720 = vadd.f32 %v1649, %v1704
  %v1721 = vadd.f32 %v1650, %v1705
  %v1722 = vadd.f32 %v1651, %v1706
  %v1723 = vadd.f32 %v1652, %v1707
  %v1724 = vadd.f32 %v1653, %v1708
  %v1725 = vadd.f32 %v1654, %v1709
  %v1726 = vadd.f32 %v1655, %v1710
  %v1727 = vadd.f32 %v1656, %v1711
  %s1728 = scalar_lea.vmem %s0, 96
  %v1729 = vld [vmem:[%s1728] ss:$8 sm:$0xf]
  %1730 = vset.pattern.permute.xlu0 24
  %1731 = vperm.xlu0 %1730, %v17
  %v1732 = vpop.permute.xlu0 %1731
  %1734 = vset.pattern.permute.xlu0 24
  %1735 = vperm.xlu0 %1734, %v18
  %v1736 = vpop.permute.xlu0 %1735
  %1738 = vset.pattern.permute.xlu0 24
  %1739 = vperm.xlu0 %1738, %v19
  %v1740 = vpop.permute.xlu0 %1739
  %1742 = vset.pattern.permute.xlu0 24
  %1743 = vperm.xlu0 %1742, %v20
  %v1744 = vpop.permute.xlu0 %1743
  %v1747 = vlaneseq
  %v1748 = vshrl.u32 %v1747, 7
  %v1749 = vsub.s32 0, %v1748
  %v1750 = vrot.slane %v1729, %v1749
  %v1751 = vlaneseq
  %v1752 = vshrl.u32 %v1751, 7
  %v1753 = vsub.s32 1, %v1752
  %v1754 = vrot.slane %v1729, %v1753
  %v1755 = vlaneseq
  %v1756 = vshrl.u32 %v1755, 7
  %v1757 = vsub.s32 2, %v1756
  %v1758 = vrot.slane %v1729, %v1757
  %v1759 = vlaneseq
  %v1760 = vshrl.u32 %v1759, 7
  %v1761 = vsub.s32 3, %v1760
  %v1762 = vrot.slane %v1729, %v1761
  %v1767 = vmul.f32 %v1732, %v1750
  %v1768 = vmul.f32 %v1732, %v1754
  %v1769 = vmul.f32 %v1732, %v1758
  %v1770 = vmul.f32 %v1732, %v1762
  %v1771 = vmul.f32 %v1736, %v1750
  %v1772 = vmul.f32 %v1736, %v1754
  %v1773 = vmul.f32 %v1736, %v1758
  %v1774 = vmul.f32 %v1736, %v1762
  %v1775 = vmul.f32 %v1740, %v1750
  %v1776 = vmul.f32 %v1740, %v1754
  %v1777 = vmul.f32 %v1740, %v1758
  %v1778 = vmul.f32 %v1740, %v1762
  %v1779 = vmul.f32 %v1744, %v1750
  %v1780 = vmul.f32 %v1744, %v1754
  %v1781 = vmul.f32 %v1744, %v1758
  %v1782 = vmul.f32 %v1744, %v1762
  %v1783 = vadd.f32 %v1712, %v1767
  %v1784 = vadd.f32 %v1713, %v1768
  %v1785 = vadd.f32 %v1714, %v1769
  %v1786 = vadd.f32 %v1715, %v1770
  %v1787 = vadd.f32 %v1716, %v1771
  %v1788 = vadd.f32 %v1717, %v1772
  %v1789 = vadd.f32 %v1718, %v1773
  %v1790 = vadd.f32 %v1719, %v1774
  %v1791 = vadd.f32 %v1720, %v1775
  %v1792 = vadd.f32 %v1721, %v1776
  %v1793 = vadd.f32 %v1722, %v1777
  %v1794 = vadd.f32 %v1723, %v1778
  %v1795 = vadd.f32 %v1724, %v1779
  %v1796 = vadd.f32 %v1725, %v1780
  %v1797 = vadd.f32 %v1726, %v1781
  %v1798 = vadd.f32 %v1727, %v1782
  %s1799 = scalar_lea.vmem %s0, 97
  %v1800 = vld [vmem:[%s1799] ss:$8 sm:$0xf]
  %1801 = vset.pattern.permute.xlu0 25
  %1802 = vperm.xlu0 %1801, %v17
  %v1803 = vpop.permute.xlu0 %1802
  %1805 = vset.pattern.permute.xlu0 25
  %1806 = vperm.xlu0 %1805, %v18
  %v1807 = vpop.permute.xlu0 %1806
  %1809 = vset.pattern.permute.xlu0 25
  %1810 = vperm.xlu0 %1809, %v19
  %v1811 = vpop.permute.xlu0 %1810
  %1813 = vset.pattern.permute.xlu0 25
  %1814 = vperm.xlu0 %1813, %v20
  %v1815 = vpop.permute.xlu0 %1814
  %v1818 = vlaneseq
  %v1819 = vshrl.u32 %v1818, 7
  %v1820 = vsub.s32 0, %v1819
  %v1821 = vrot.slane %v1800, %v1820
  %v1822 = vlaneseq
  %v1823 = vshrl.u32 %v1822, 7
  %v1824 = vsub.s32 1, %v1823
  %v1825 = vrot.slane %v1800, %v1824
  %v1826 = vlaneseq
  %v1827 = vshrl.u32 %v1826, 7
  %v1828 = vsub.s32 2, %v1827
  %v1829 = vrot.slane %v1800, %v1828
  %v1830 = vlaneseq
  %v1831 = vshrl.u32 %v1830, 7
  %v1832 = vsub.s32 3, %v1831
  %v1833 = vrot.slane %v1800, %v1832
  %v1838 = vmul.f32 %v1803, %v1821
  %v1839 = vmul.f32 %v1803, %v1825
  %v1840 = vmul.f32 %v1803, %v1829
  %v1841 = vmul.f32 %v1803, %v1833
  %v1842 = vmul.f32 %v1807, %v1821
  %v1843 = vmul.f32 %v1807, %v1825
  %v1844 = vmul.f32 %v1807, %v1829
  %v1845 = vmul.f32 %v1807, %v1833
  %v1846 = vmul.f32 %v1811, %v1821
  %v1847 = vmul.f32 %v1811, %v1825
  %v1848 = vmul.f32 %v1811, %v1829
  %v1849 = vmul.f32 %v1811, %v1833
  %v1850 = vmul.f32 %v1815, %v1821
  %v1851 = vmul.f32 %v1815, %v1825
  %v1852 = vmul.f32 %v1815, %v1829
  %v1853 = vmul.f32 %v1815, %v1833
  %v1854 = vadd.f32 %v1783, %v1838
  %v1855 = vadd.f32 %v1784, %v1839
  %v1856 = vadd.f32 %v1785, %v1840
  %v1857 = vadd.f32 %v1786, %v1841
  %v1858 = vadd.f32 %v1787, %v1842
  %v1859 = vadd.f32 %v1788, %v1843
  %v1860 = vadd.f32 %v1789, %v1844
  %v1861 = vadd.f32 %v1790, %v1845
  %v1862 = vadd.f32 %v1791, %v1846
  %v1863 = vadd.f32 %v1792, %v1847
  %v1864 = vadd.f32 %v1793, %v1848
  %v1865 = vadd.f32 %v1794, %v1849
  %v1866 = vadd.f32 %v1795, %v1850
  %v1867 = vadd.f32 %v1796, %v1851
  %v1868 = vadd.f32 %v1797, %v1852
  %v1869 = vadd.f32 %v1798, %v1853
  %s1870 = scalar_lea.vmem %s0, 98
  %v1871 = vld [vmem:[%s1870] ss:$8 sm:$0xf]
  %1872 = vset.pattern.permute.xlu0 26
  %1873 = vperm.xlu0 %1872, %v17
  %v1874 = vpop.permute.xlu0 %1873
  %1876 = vset.pattern.permute.xlu0 26
  %1877 = vperm.xlu0 %1876, %v18
  %v1878 = vpop.permute.xlu0 %1877
  %1880 = vset.pattern.permute.xlu0 26
  %1881 = vperm.xlu0 %1880, %v19
  %v1882 = vpop.permute.xlu0 %1881
  %1884 = vset.pattern.permute.xlu0 26
  %1885 = vperm.xlu0 %1884, %v20
  %v1886 = vpop.permute.xlu0 %1885
  %v1889 = vlaneseq
  %v1890 = vshrl.u32 %v1889, 7
  %v1891 = vsub.s32 0, %v1890
  %v1892 = vrot.slane %v1871, %v1891
  %v1893 = vlaneseq
  %v1894 = vshrl.u32 %v1893, 7
  %v1895 = vsub.s32 1, %v1894
  %v1896 = vrot.slane %v1871, %v1895
  %v1897 = vlaneseq
  %v1898 = vshrl.u32 %v1897, 7
  %v1899 = vsub.s32 2, %v1898
  %v1900 = vrot.slane %v1871, %v1899
  %v1901 = vlaneseq
  %v1902 = vshrl.u32 %v1901, 7
  %v1903 = vsub.s32 3, %v1902
  %v1904 = vrot.slane %v1871, %v1903
  %v1909 = vmul.f32 %v1874, %v1892
  %v1910 = vmul.f32 %v1874, %v1896
  %v1911 = vmul.f32 %v1874, %v1900
  %v1912 = vmul.f32 %v1874, %v1904
  %v1913 = vmul.f32 %v1878, %v1892
  %v1914 = vmul.f32 %v1878, %v1896
  %v1915 = vmul.f32 %v1878, %v1900
  %v1916 = vmul.f32 %v1878, %v1904
  %v1917 = vmul.f32 %v1882, %v1892
  %v1918 = vmul.f32 %v1882, %v1896
  %v1919 = vmul.f32 %v1882, %v1900
  %v1920 = vmul.f32 %v1882, %v1904
  %v1921 = vmul.f32 %v1886, %v1892
  %v1922 = vmul.f32 %v1886, %v1896
  %v1923 = vmul.f32 %v1886, %v1900
  %v1924 = vmul.f32 %v1886, %v1904
  %v1925 = vadd.f32 %v1854, %v1909
  %v1926 = vadd.f32 %v1855, %v1910
  %v1927 = vadd.f32 %v1856, %v1911
  %v1928 = vadd.f32 %v1857, %v1912
  %v1929 = vadd.f32 %v1858, %v1913
  %v1930 = vadd.f32 %v1859, %v1914
  %v1931 = vadd.f32 %v1860, %v1915
  %v1932 = vadd.f32 %v1861, %v1916
  %v1933 = vadd.f32 %v1862, %v1917
  %v1934 = vadd.f32 %v1863, %v1918
  %v1935 = vadd.f32 %v1864, %v1919
  %v1936 = vadd.f32 %v1865, %v1920
  %v1937 = vadd.f32 %v1866, %v1921
  %v1938 = vadd.f32 %v1867, %v1922
  %v1939 = vadd.f32 %v1868, %v1923
  %v1940 = vadd.f32 %v1869, %v1924
  %s1941 = scalar_lea.vmem %s0, 99
  %v1942 = vld [vmem:[%s1941] ss:$8 sm:$0xf]
  %1943 = vset.pattern.permute.xlu0 27
  %1944 = vperm.xlu0 %1943, %v17
  %v1945 = vpop.permute.xlu0 %1944
  %1947 = vset.pattern.permute.xlu0 27
  %1948 = vperm.xlu0 %1947, %v18
  %v1949 = vpop.permute.xlu0 %1948
  %1951 = vset.pattern.permute.xlu0 27
  %1952 = vperm.xlu0 %1951, %v19
  %v1953 = vpop.permute.xlu0 %1952
  %1955 = vset.pattern.permute.xlu0 27
  %1956 = vperm.xlu0 %1955, %v20
  %v1957 = vpop.permute.xlu0 %1956
  %v1960 = vlaneseq
  %v1961 = vshrl.u32 %v1960, 7
  %v1962 = vsub.s32 0, %v1961
  %v1963 = vrot.slane %v1942, %v1962
  %v1964 = vlaneseq
  %v1965 = vshrl.u32 %v1964, 7
  %v1966 = vsub.s32 1, %v1965
  %v1967 = vrot.slane %v1942, %v1966
  %v1968 = vlaneseq
  %v1969 = vshrl.u32 %v1968, 7
  %v1970 = vsub.s32 2, %v1969
  %v1971 = vrot.slane %v1942, %v1970
  %v1972 = vlaneseq
  %v1973 = vshrl.u32 %v1972, 7
  %v1974 = vsub.s32 3, %v1973
  %v1975 = vrot.slane %v1942, %v1974
  %v1980 = vmul.f32 %v1945, %v1963
  %v1981 = vmul.f32 %v1945, %v1967
  %v1982 = vmul.f32 %v1945, %v1971
  %v1983 = vmul.f32 %v1945, %v1975
  %v1984 = vmul.f32 %v1949, %v1963
  %v1985 = vmul.f32 %v1949, %v1967
  %v1986 = vmul.f32 %v1949, %v1971
  %v1987 = vmul.f32 %v1949, %v1975
  %v1988 = vmul.f32 %v1953, %v1963
  %v1989 = vmul.f32 %v1953, %v1967
  %v1990 = vmul.f32 %v1953, %v1971
  %v1991 = vmul.f32 %v1953, %v1975
  %v1992 = vmul.f32 %v1957, %v1963
  %v1993 = vmul.f32 %v1957, %v1967
  %v1994 = vmul.f32 %v1957, %v1971
  %v1995 = vmul.f32 %v1957, %v1975
  %v1996 = vadd.f32 %v1925, %v1980
  %v1997 = vadd.f32 %v1926, %v1981
  %v1998 = vadd.f32 %v1927, %v1982
  %v1999 = vadd.f32 %v1928, %v1983
  %v2000 = vadd.f32 %v1929, %v1984
  %v2001 = vadd.f32 %v1930, %v1985
  %v2002 = vadd.f32 %v1931, %v1986
  %v2003 = vadd.f32 %v1932, %v1987
  %v2004 = vadd.f32 %v1933, %v1988
  %v2005 = vadd.f32 %v1934, %v1989
  %v2006 = vadd.f32 %v1935, %v1990
  %v2007 = vadd.f32 %v1936, %v1991
  %v2008 = vadd.f32 %v1937, %v1992
  %v2009 = vadd.f32 %v1938, %v1993
  %v2010 = vadd.f32 %v1939, %v1994
  %v2011 = vadd.f32 %v1940, %v1995
  %s2012 = scalar_lea.vmem %s0, 100
  %v2013 = vld [vmem:[%s2012] ss:$8 sm:$0xf]
  %2014 = vset.pattern.permute.xlu0 28
  %2015 = vperm.xlu0 %2014, %v17
  %v2016 = vpop.permute.xlu0 %2015
  %2018 = vset.pattern.permute.xlu0 28
  %2019 = vperm.xlu0 %2018, %v18
  %v2020 = vpop.permute.xlu0 %2019
  %2022 = vset.pattern.permute.xlu0 28
  %2023 = vperm.xlu0 %2022, %v19
  %v2024 = vpop.permute.xlu0 %2023
  %2026 = vset.pattern.permute.xlu0 28
  %2027 = vperm.xlu0 %2026, %v20
  %v2028 = vpop.permute.xlu0 %2027
  %v2031 = vlaneseq
  %v2032 = vshrl.u32 %v2031, 7
  %v2033 = vsub.s32 0, %v2032
  %v2034 = vrot.slane %v2013, %v2033
  %v2035 = vlaneseq
  %v2036 = vshrl.u32 %v2035, 7
  %v2037 = vsub.s32 1, %v2036
  %v2038 = vrot.slane %v2013, %v2037
  %v2039 = vlaneseq
  %v2040 = vshrl.u32 %v2039, 7
  %v2041 = vsub.s32 2, %v2040
  %v2042 = vrot.slane %v2013, %v2041
  %v2043 = vlaneseq
  %v2044 = vshrl.u32 %v2043, 7
  %v2045 = vsub.s32 3, %v2044
  %v2046 = vrot.slane %v2013, %v2045
  %v2051 = vmul.f32 %v2016, %v2034
  %v2052 = vmul.f32 %v2016, %v2038
  %v2053 = vmul.f32 %v2016, %v2042
  %v2054 = vmul.f32 %v2016, %v2046
  %v2055 = vmul.f32 %v2020, %v2034
  %v2056 = vmul.f32 %v2020, %v2038
  %v2057 = vmul.f32 %v2020, %v2042
  %v2058 = vmul.f32 %v2020, %v2046
  %v2059 = vmul.f32 %v2024, %v2034
  %v2060 = vmul.f32 %v2024, %v2038
  %v2061 = vmul.f32 %v2024, %v2042
  %v2062 = vmul.f32 %v2024, %v2046
  %v2063 = vmul.f32 %v2028, %v2034
  %v2064 = vmul.f32 %v2028, %v2038
  %v2065 = vmul.f32 %v2028, %v2042
  %v2066 = vmul.f32 %v2028, %v2046
  %v2067 = vadd.f32 %v1996, %v2051
  %v2068 = vadd.f32 %v1997, %v2052
  %v2069 = vadd.f32 %v1998, %v2053
  %v2070 = vadd.f32 %v1999, %v2054
  %v2071 = vadd.f32 %v2000, %v2055
  %v2072 = vadd.f32 %v2001, %v2056
  %v2073 = vadd.f32 %v2002, %v2057
  %v2074 = vadd.f32 %v2003, %v2058
  %v2075 = vadd.f32 %v2004, %v2059
  %v2076 = vadd.f32 %v2005, %v2060
  %v2077 = vadd.f32 %v2006, %v2061
  %v2078 = vadd.f32 %v2007, %v2062
  %v2079 = vadd.f32 %v2008, %v2063
  %v2080 = vadd.f32 %v2009, %v2064
  %v2081 = vadd.f32 %v2010, %v2065
  %v2082 = vadd.f32 %v2011, %v2066
  %s2083 = scalar_lea.vmem %s0, 101
  %v2084 = vld [vmem:[%s2083] ss:$8 sm:$0xf]
  %2085 = vset.pattern.permute.xlu0 29
  %2086 = vperm.xlu0 %2085, %v17
  %v2087 = vpop.permute.xlu0 %2086
  %2089 = vset.pattern.permute.xlu0 29
  %2090 = vperm.xlu0 %2089, %v18
  %v2091 = vpop.permute.xlu0 %2090
  %2093 = vset.pattern.permute.xlu0 29
  %2094 = vperm.xlu0 %2093, %v19
  %v2095 = vpop.permute.xlu0 %2094
  %2097 = vset.pattern.permute.xlu0 29
  %2098 = vperm.xlu0 %2097, %v20
  %v2099 = vpop.permute.xlu0 %2098
  %v2102 = vlaneseq
  %v2103 = vshrl.u32 %v2102, 7
  %v2104 = vsub.s32 0, %v2103
  %v2105 = vrot.slane %v2084, %v2104
  %v2106 = vlaneseq
  %v2107 = vshrl.u32 %v2106, 7
  %v2108 = vsub.s32 1, %v2107
  %v2109 = vrot.slane %v2084, %v2108
  %v2110 = vlaneseq
  %v2111 = vshrl.u32 %v2110, 7
  %v2112 = vsub.s32 2, %v2111
  %v2113 = vrot.slane %v2084, %v2112
  %v2114 = vlaneseq
  %v2115 = vshrl.u32 %v2114, 7
  %v2116 = vsub.s32 3, %v2115
  %v2117 = vrot.slane %v2084, %v2116
  %v2122 = vmul.f32 %v2087, %v2105
  %v2123 = vmul.f32 %v2087, %v2109
  %v2124 = vmul.f32 %v2087, %v2113
  %v2125 = vmul.f32 %v2087, %v2117
  %v2126 = vmul.f32 %v2091, %v2105
  %v2127 = vmul.f32 %v2091, %v2109
  %v2128 = vmul.f32 %v2091, %v2113
  %v2129 = vmul.f32 %v2091, %v2117
  %v2130 = vmul.f32 %v2095, %v2105
  %v2131 = vmul.f32 %v2095, %v2109
  %v2132 = vmul.f32 %v2095, %v2113
  %v2133 = vmul.f32 %v2095, %v2117
  %v2134 = vmul.f32 %v2099, %v2105
  %v2135 = vmul.f32 %v2099, %v2109
  %v2136 = vmul.f32 %v2099, %v2113
  %v2137 = vmul.f32 %v2099, %v2117
  %v2138 = vadd.f32 %v2067, %v2122
  %v2139 = vadd.f32 %v2068, %v2123
  %v2140 = vadd.f32 %v2069, %v2124
  %v2141 = vadd.f32 %v2070, %v2125
  %v2142 = vadd.f32 %v2071, %v2126
  %v2143 = vadd.f32 %v2072, %v2127
  %v2144 = vadd.f32 %v2073, %v2128
  %v2145 = vadd.f32 %v2074, %v2129
  %v2146 = vadd.f32 %v2075, %v2130
  %v2147 = vadd.f32 %v2076, %v2131
  %v2148 = vadd.f32 %v2077, %v2132
  %v2149 = vadd.f32 %v2078, %v2133
  %v2150 = vadd.f32 %v2079, %v2134
  %v2151 = vadd.f32 %v2080, %v2135
  %v2152 = vadd.f32 %v2081, %v2136
  %v2153 = vadd.f32 %v2082, %v2137
  %s2154 = scalar_lea.vmem %s0, 102
  %v2155 = vld [vmem:[%s2154] ss:$8 sm:$0xf]
  %2156 = vset.pattern.permute.xlu0 30
  %2157 = vperm.xlu0 %2156, %v17
  %v2158 = vpop.permute.xlu0 %2157
  %2160 = vset.pattern.permute.xlu0 30
  %2161 = vperm.xlu0 %2160, %v18
  %v2162 = vpop.permute.xlu0 %2161
  %2164 = vset.pattern.permute.xlu0 30
  %2165 = vperm.xlu0 %2164, %v19
  %v2166 = vpop.permute.xlu0 %2165
  %2168 = vset.pattern.permute.xlu0 30
  %2169 = vperm.xlu0 %2168, %v20
  %v2170 = vpop.permute.xlu0 %2169
  %v2173 = vlaneseq
  %v2174 = vshrl.u32 %v2173, 7
  %v2175 = vsub.s32 0, %v2174
  %v2176 = vrot.slane %v2155, %v2175
  %v2177 = vlaneseq
  %v2178 = vshrl.u32 %v2177, 7
  %v2179 = vsub.s32 1, %v2178
  %v2180 = vrot.slane %v2155, %v2179
  %v2181 = vlaneseq
  %v2182 = vshrl.u32 %v2181, 7
  %v2183 = vsub.s32 2, %v2182
  %v2184 = vrot.slane %v2155, %v2183
  %v2185 = vlaneseq
  %v2186 = vshrl.u32 %v2185, 7
  %v2187 = vsub.s32 3, %v2186
  %v2188 = vrot.slane %v2155, %v2187
  %v2193 = vmul.f32 %v2158, %v2176
  %v2194 = vmul.f32 %v2158, %v2180
  %v2195 = vmul.f32 %v2158, %v2184
  %v2196 = vmul.f32 %v2158, %v2188
  %v2197 = vmul.f32 %v2162, %v2176
  %v2198 = vmul.f32 %v2162, %v2180
  %v2199 = vmul.f32 %v2162, %v2184
  %v2200 = vmul.f32 %v2162, %v2188
  %v2201 = vmul.f32 %v2166, %v2176
  %v2202 = vmul.f32 %v2166, %v2180
  %v2203 = vmul.f32 %v2166, %v2184
  %v2204 = vmul.f32 %v2166, %v2188
  %v2205 = vmul.f32 %v2170, %v2176
  %v2206 = vmul.f32 %v2170, %v2180
  %v2207 = vmul.f32 %v2170, %v2184
  %v2208 = vmul.f32 %v2170, %v2188
  %v2209 = vadd.f32 %v2138, %v2193
  %v2210 = vadd.f32 %v2139, %v2194
  %v2211 = vadd.f32 %v2140, %v2195
  %v2212 = vadd.f32 %v2141, %v2196
  %v2213 = vadd.f32 %v2142, %v2197
  %v2214 = vadd.f32 %v2143, %v2198
  %v2215 = vadd.f32 %v2144, %v2199
  %v2216 = vadd.f32 %v2145, %v2200
  %v2217 = vadd.f32 %v2146, %v2201
  %v2218 = vadd.f32 %v2147, %v2202
  %v2219 = vadd.f32 %v2148, %v2203
  %v2220 = vadd.f32 %v2149, %v2204
  %v2221 = vadd.f32 %v2150, %v2205
  %v2222 = vadd.f32 %v2151, %v2206
  %v2223 = vadd.f32 %v2152, %v2207
  %v2224 = vadd.f32 %v2153, %v2208
  %s2225 = scalar_lea.vmem %s0, 103
  %v2226 = vld [vmem:[%s2225] ss:$8 sm:$0xf]
  %2227 = vset.pattern.permute.xlu0 31
  %2228 = vperm.xlu0 %2227, %v17
  %v2229 = vpop.permute.xlu0 %2228
  %2231 = vset.pattern.permute.xlu0 31
  %2232 = vperm.xlu0 %2231, %v18
  %v2233 = vpop.permute.xlu0 %2232
  %2235 = vset.pattern.permute.xlu0 31
  %2236 = vperm.xlu0 %2235, %v19
  %v2237 = vpop.permute.xlu0 %2236
  %2239 = vset.pattern.permute.xlu0 31
  %2240 = vperm.xlu0 %2239, %v20
  %v2241 = vpop.permute.xlu0 %2240
  %v2244 = vlaneseq
  %v2245 = vshrl.u32 %v2244, 7
  %v2246 = vsub.s32 0, %v2245
  %v2247 = vrot.slane %v2226, %v2246
  %v2248 = vlaneseq
  %v2249 = vshrl.u32 %v2248, 7
  %v2250 = vsub.s32 1, %v2249
  %v2251 = vrot.slane %v2226, %v2250
  %v2252 = vlaneseq
  %v2253 = vshrl.u32 %v2252, 7
  %v2254 = vsub.s32 2, %v2253
  %v2255 = vrot.slane %v2226, %v2254
  %v2256 = vlaneseq
  %v2257 = vshrl.u32 %v2256, 7
  %v2258 = vsub.s32 3, %v2257
  %v2259 = vrot.slane %v2226, %v2258
  %v2264 = vmul.f32 %v2229, %v2247
  %v2265 = vmul.f32 %v2229, %v2251
  %v2266 = vmul.f32 %v2229, %v2255
  %v2267 = vmul.f32 %v2229, %v2259
  %v2268 = vmul.f32 %v2233, %v2247
  %v2269 = vmul.f32 %v2233, %v2251
  %v2270 = vmul.f32 %v2233, %v2255
  %v2271 = vmul.f32 %v2233, %v2259
  %v2272 = vmul.f32 %v2237, %v2247
  %v2273 = vmul.f32 %v2237, %v2251
  %v2274 = vmul.f32 %v2237, %v2255
  %v2275 = vmul.f32 %v2237, %v2259
  %v2276 = vmul.f32 %v2241, %v2247
  %v2277 = vmul.f32 %v2241, %v2251
  %v2278 = vmul.f32 %v2241, %v2255
  %v2279 = vmul.f32 %v2241, %v2259
  %v2280 = vadd.f32 %v2209, %v2264
  %v2281 = vadd.f32 %v2210, %v2265
  %v2282 = vadd.f32 %v2211, %v2266
  %v2283 = vadd.f32 %v2212, %v2267
  %v2284 = vadd.f32 %v2213, %v2268
  %v2285 = vadd.f32 %v2214, %v2269
  %v2286 = vadd.f32 %v2215, %v2270
  %v2287 = vadd.f32 %v2216, %v2271
  %v2288 = vadd.f32 %v2217, %v2272
  %v2289 = vadd.f32 %v2218, %v2273
  %v2290 = vadd.f32 %v2219, %v2274
  %v2291 = vadd.f32 %v2220, %v2275
  %v2292 = vadd.f32 %v2221, %v2276
  %v2293 = vadd.f32 %v2222, %v2277
  %v2294 = vadd.f32 %v2223, %v2278
  %v2295 = vadd.f32 %v2224, %v2279
  %s2296 = scalar_lea.vmem %s0, 128
  %v2297 = vld [vmem:[%s2296] ss:$8 sm:$0xf]
  %2298 = vset.pattern.permute.xlu0 32
  %2299 = vperm.xlu0 %2298, %v17
  %v2300 = vpop.permute.xlu0 %2299
  %2302 = vset.pattern.permute.xlu0 32
  %2303 = vperm.xlu0 %2302, %v18
  %v2304 = vpop.permute.xlu0 %2303
  %2306 = vset.pattern.permute.xlu0 32
  %2307 = vperm.xlu0 %2306, %v19
  %v2308 = vpop.permute.xlu0 %2307
  %2310 = vset.pattern.permute.xlu0 32
  %2311 = vperm.xlu0 %2310, %v20
  %v2312 = vpop.permute.xlu0 %2311
  %v2315 = vlaneseq
  %v2316 = vshrl.u32 %v2315, 7
  %v2317 = vsub.s32 0, %v2316
  %v2318 = vrot.slane %v2297, %v2317
  %v2319 = vlaneseq
  %v2320 = vshrl.u32 %v2319, 7
  %v2321 = vsub.s32 1, %v2320
  %v2322 = vrot.slane %v2297, %v2321
  %v2323 = vlaneseq
  %v2324 = vshrl.u32 %v2323, 7
  %v2325 = vsub.s32 2, %v2324
  %v2326 = vrot.slane %v2297, %v2325
  %v2327 = vlaneseq
  %v2328 = vshrl.u32 %v2327, 7
  %v2329 = vsub.s32 3, %v2328
  %v2330 = vrot.slane %v2297, %v2329
  %v2335 = vmul.f32 %v2300, %v2318
  %v2336 = vmul.f32 %v2300, %v2322
  %v2337 = vmul.f32 %v2300, %v2326
  %v2338 = vmul.f32 %v2300, %v2330
  %v2339 = vmul.f32 %v2304, %v2318
  %v2340 = vmul.f32 %v2304, %v2322
  %v2341 = vmul.f32 %v2304, %v2326
  %v2342 = vmul.f32 %v2304, %v2330
  %v2343 = vmul.f32 %v2308, %v2318
  %v2344 = vmul.f32 %v2308, %v2322
  %v2345 = vmul.f32 %v2308, %v2326
  %v2346 = vmul.f32 %v2308, %v2330
  %v2347 = vmul.f32 %v2312, %v2318
  %v2348 = vmul.f32 %v2312, %v2322
  %v2349 = vmul.f32 %v2312, %v2326
  %v2350 = vmul.f32 %v2312, %v2330
  %v2351 = vadd.f32 %v2280, %v2335
  %v2352 = vadd.f32 %v2281, %v2336
  %v2353 = vadd.f32 %v2282, %v2337
  %v2354 = vadd.f32 %v2283, %v2338
  %v2355 = vadd.f32 %v2284, %v2339
  %v2356 = vadd.f32 %v2285, %v2340
  %v2357 = vadd.f32 %v2286, %v2341
  %v2358 = vadd.f32 %v2287, %v2342
  %v2359 = vadd.f32 %v2288, %v2343
  %v2360 = vadd.f32 %v2289, %v2344
  %v2361 = vadd.f32 %v2290, %v2345
  %v2362 = vadd.f32 %v2291, %v2346
  %v2363 = vadd.f32 %v2292, %v2347
  %v2364 = vadd.f32 %v2293, %v2348
  %v2365 = vadd.f32 %v2294, %v2349
  %v2366 = vadd.f32 %v2295, %v2350
  %s2367 = scalar_lea.vmem %s0, 129
  %v2368 = vld [vmem:[%s2367] ss:$8 sm:$0xf]
  %2369 = vset.pattern.permute.xlu0 33
  %2370 = vperm.xlu0 %2369, %v17
  %v2371 = vpop.permute.xlu0 %2370
  %2373 = vset.pattern.permute.xlu0 33
  %2374 = vperm.xlu0 %2373, %v18
  %v2375 = vpop.permute.xlu0 %2374
  %2377 = vset.pattern.permute.xlu0 33
  %2378 = vperm.xlu0 %2377, %v19
  %v2379 = vpop.permute.xlu0 %2378
  %2381 = vset.pattern.permute.xlu0 33
  %2382 = vperm.xlu0 %2381, %v20
  %v2383 = vpop.permute.xlu0 %2382
  %v2386 = vlaneseq
  %v2387 = vshrl.u32 %v2386, 7
  %v2388 = vsub.s32 0, %v2387
  %v2389 = vrot.slane %v2368, %v2388
  %v2390 = vlaneseq
  %v2391 = vshrl.u32 %v2390, 7
  %v2392 = vsub.s32 1, %v2391
  %v2393 = vrot.slane %v2368, %v2392
  %v2394 = vlaneseq
  %v2395 = vshrl.u32 %v2394, 7
  %v2396 = vsub.s32 2, %v2395
  %v2397 = vrot.slane %v2368, %v2396
  %v2398 = vlaneseq
  %v2399 = vshrl.u32 %v2398, 7
  %v2400 = vsub.s32 3, %v2399
  %v2401 = vrot.slane %v2368, %v2400
  %v2406 = vmul.f32 %v2371, %v2389
  %v2407 = vmul.f32 %v2371, %v2393
  %v2408 = vmul.f32 %v2371, %v2397
  %v2409 = vmul.f32 %v2371, %v2401
  %v2410 = vmul.f32 %v2375, %v2389
  %v2411 = vmul.f32 %v2375, %v2393
  %v2412 = vmul.f32 %v2375, %v2397
  %v2413 = vmul.f32 %v2375, %v2401
  %v2414 = vmul.f32 %v2379, %v2389
  %v2415 = vmul.f32 %v2379, %v2393
  %v2416 = vmul.f32 %v2379, %v2397
  %v2417 = vmul.f32 %v2379, %v2401
  %v2418 = vmul.f32 %v2383, %v2389
  %v2419 = vmul.f32 %v2383, %v2393
  %v2420 = vmul.f32 %v2383, %v2397
  %v2421 = vmul.f32 %v2383, %v2401
  %v2422 = vadd.f32 %v2351, %v2406
  %v2423 = vadd.f32 %v2352, %v2407
  %v2424 = vadd.f32 %v2353, %v2408
  %v2425 = vadd.f32 %v2354, %v2409
  %v2426 = vadd.f32 %v2355, %v2410
  %v2427 = vadd.f32 %v2356, %v2411
  %v2428 = vadd.f32 %v2357, %v2412
  %v2429 = vadd.f32 %v2358, %v2413
  %v2430 = vadd.f32 %v2359, %v2414
  %v2431 = vadd.f32 %v2360, %v2415
  %v2432 = vadd.f32 %v2361, %v2416
  %v2433 = vadd.f32 %v2362, %v2417
  %v2434 = vadd.f32 %v2363, %v2418
  %v2435 = vadd.f32 %v2364, %v2419
  %v2436 = vadd.f32 %v2365, %v2420
  %v2437 = vadd.f32 %v2366, %v2421
  %s2438 = scalar_lea.vmem %s0, 130
  %v2439 = vld [vmem:[%s2438] ss:$8 sm:$0xf]
  %2440 = vset.pattern.permute.xlu0 34
  %2441 = vperm.xlu0 %2440, %v17
  %v2442 = vpop.permute.xlu0 %2441
  %2444 = vset.pattern.permute.xlu0 34
  %2445 = vperm.xlu0 %2444, %v18
  %v2446 = vpop.permute.xlu0 %2445
  %2448 = vset.pattern.permute.xlu0 34
  %2449 = vperm.xlu0 %2448, %v19
  %v2450 = vpop.permute.xlu0 %2449
  %2452 = vset.pattern.permute.xlu0 34
  %2453 = vperm.xlu0 %2452, %v20
  %v2454 = vpop.permute.xlu0 %2453
  %v2457 = vlaneseq
  %v2458 = vshrl.u32 %v2457, 7
  %v2459 = vsub.s32 0, %v2458
  %v2460 = vrot.slane %v2439, %v2459
  %v2461 = vlaneseq
  %v2462 = vshrl.u32 %v2461, 7
  %v2463 = vsub.s32 1, %v2462
  %v2464 = vrot.slane %v2439, %v2463
  %v2465 = vlaneseq
  %v2466 = vshrl.u32 %v2465, 7
  %v2467 = vsub.s32 2, %v2466
  %v2468 = vrot.slane %v2439, %v2467
  %v2469 = vlaneseq
  %v2470 = vshrl.u32 %v2469, 7
  %v2471 = vsub.s32 3, %v2470
  %v2472 = vrot.slane %v2439, %v2471
  %v2477 = vmul.f32 %v2442, %v2460
  %v2478 = vmul.f32 %v2442, %v2464
  %v2479 = vmul.f32 %v2442, %v2468
  %v2480 = vmul.f32 %v2442, %v2472
  %v2481 = vmul.f32 %v2446, %v2460
  %v2482 = vmul.f32 %v2446, %v2464
  %v2483 = vmul.f32 %v2446, %v2468
  %v2484 = vmul.f32 %v2446, %v2472
  %v2485 = vmul.f32 %v2450, %v2460
  %v2486 = vmul.f32 %v2450, %v2464
  %v2487 = vmul.f32 %v2450, %v2468
  %v2488 = vmul.f32 %v2450, %v2472
  %v2489 = vmul.f32 %v2454, %v2460
  %v2490 = vmul.f32 %v2454, %v2464
  %v2491 = vmul.f32 %v2454, %v2468
  %v2492 = vmul.f32 %v2454, %v2472
  %v2493 = vadd.f32 %v2422, %v2477
  %v2494 = vadd.f32 %v2423, %v2478
  %v2495 = vadd.f32 %v2424, %v2479
  %v2496 = vadd.f32 %v2425, %v2480
  %v2497 = vadd.f32 %v2426, %v2481
  %v2498 = vadd.f32 %v2427, %v2482
  %v2499 = vadd.f32 %v2428, %v2483
  %v2500 = vadd.f32 %v2429, %v2484
  %v2501 = vadd.f32 %v2430, %v2485
  %v2502 = vadd.f32 %v2431, %v2486
  %v2503 = vadd.f32 %v2432, %v2487
  %v2504 = vadd.f32 %v2433, %v2488
  %v2505 = vadd.f32 %v2434, %v2489
  %v2506 = vadd.f32 %v2435, %v2490
  %v2507 = vadd.f32 %v2436, %v2491
  %v2508 = vadd.f32 %v2437, %v2492
  %s2509 = scalar_lea.vmem %s0, 131
  %v2510 = vld [vmem:[%s2509] ss:$8 sm:$0xf]
  %2511 = vset.pattern.permute.xlu0 35
  %2512 = vperm.xlu0 %2511, %v17
  %v2513 = vpop.permute.xlu0 %2512
  %2515 = vset.pattern.permute.xlu0 35
  %2516 = vperm.xlu0 %2515, %v18
  %v2517 = vpop.permute.xlu0 %2516
  %2519 = vset.pattern.permute.xlu0 35
  %2520 = vperm.xlu0 %2519, %v19
  %v2521 = vpop.permute.xlu0 %2520
  %2523 = vset.pattern.permute.xlu0 35
  %2524 = vperm.xlu0 %2523, %v20
  %v2525 = vpop.permute.xlu0 %2524
  %v2528 = vlaneseq
  %v2529 = vshrl.u32 %v2528, 7
  %v2530 = vsub.s32 0, %v2529
  %v2531 = vrot.slane %v2510, %v2530
  %v2532 = vlaneseq
  %v2533 = vshrl.u32 %v2532, 7
  %v2534 = vsub.s32 1, %v2533
  %v2535 = vrot.slane %v2510, %v2534
  %v2536 = vlaneseq
  %v2537 = vshrl.u32 %v2536, 7
  %v2538 = vsub.s32 2, %v2537
  %v2539 = vrot.slane %v2510, %v2538
  %v2540 = vlaneseq
  %v2541 = vshrl.u32 %v2540, 7
  %v2542 = vsub.s32 3, %v2541
  %v2543 = vrot.slane %v2510, %v2542
  %v2548 = vmul.f32 %v2513, %v2531
  %v2549 = vmul.f32 %v2513, %v2535
  %v2550 = vmul.f32 %v2513, %v2539
  %v2551 = vmul.f32 %v2513, %v2543
  %v2552 = vmul.f32 %v2517, %v2531
  %v2553 = vmul.f32 %v2517, %v2535
  %v2554 = vmul.f32 %v2517, %v2539
  %v2555 = vmul.f32 %v2517, %v2543
  %v2556 = vmul.f32 %v2521, %v2531
  %v2557 = vmul.f32 %v2521, %v2535
  %v2558 = vmul.f32 %v2521, %v2539
  %v2559 = vmul.f32 %v2521, %v2543
  %v2560 = vmul.f32 %v2525, %v2531
  %v2561 = vmul.f32 %v2525, %v2535
  %v2562 = vmul.f32 %v2525, %v2539
  %v2563 = vmul.f32 %v2525, %v2543
  %v2564 = vadd.f32 %v2493, %v2548
  %v2565 = vadd.f32 %v2494, %v2549
  %v2566 = vadd.f32 %v2495, %v2550
  %v2567 = vadd.f32 %v2496, %v2551
  %v2568 = vadd.f32 %v2497, %v2552
  %v2569 = vadd.f32 %v2498, %v2553
  %v2570 = vadd.f32 %v2499, %v2554
  %v2571 = vadd.f32 %v2500, %v2555
  %v2572 = vadd.f32 %v2501, %v2556
  %v2573 = vadd.f32 %v2502, %v2557
  %v2574 = vadd.f32 %v2503, %v2558
  %v2575 = vadd.f32 %v2504, %v2559
  %v2576 = vadd.f32 %v2505, %v2560
  %v2577 = vadd.f32 %v2506, %v2561
  %v2578 = vadd.f32 %v2507, %v2562
  %v2579 = vadd.f32 %v2508, %v2563
  %v2580 = vadd.f32 %v2564, %v2565
  %v2581 = vadd.f32 %v2580, %v2566
  %v2582 = vadd.f32 %v2581, %v2567
  %2583 = vadd.xlane.f32.xlu0 %v2582
  %v2584 = vpop.xlane.xlu0 %2583
  %v2585 = vadd.f32 %v2584, 0.0
  %v2586 = vadd.f32 %v2568, %v2569
  %v2587 = vadd.f32 %v2586, %v2570
  %v2588 = vadd.f32 %v2587, %v2571
  %2589 = vadd.xlane.f32.xlu0 %v2588
  %v2590 = vpop.xlane.xlu0 %2589
  %v2591 = vadd.f32 %v2585, %v2590
  %v2592 = vadd.f32 %v2572, %v2573
  %v2593 = vadd.f32 %v2592, %v2574
  %v2594 = vadd.f32 %v2593, %v2575
  %2595 = vadd.xlane.f32.xlu0 %v2594
  %v2596 = vpop.xlane.xlu0 %2595
  %v2597 = vadd.f32 %v2591, %v2596
  %v2598 = vadd.f32 %v2576, %v2577
  %v2599 = vadd.f32 %v2598, %v2578
  %v2600 = vadd.f32 %v2599, %v2579
  %2601 = vadd.xlane.f32.xlu0 %v2600
  %v2602 = vpop.xlane.xlu0 %2601
  %v2603 = vadd.f32 %v2597, %v2602
  %v2604 = vmul.f32 %v2603, 0.00048828125
  %v2605 = vsub.f32 %v2564, %v2604
  %v2606 = vsub.f32 %v2565, %v2604
  %v2607 = vsub.f32 %v2566, %v2604
  %v2608 = vsub.f32 %v2567, %v2604
  %v2609 = vmul.f32 %v2605, %v2605
  %v2610 = vmul.f32 %v2606, %v2606
  %v2611 = vmul.f32 %v2607, %v2607
  %v2612 = vmul.f32 %v2608, %v2608
  %v2613 = vadd.f32 %v2609, %v2610
  %v2614 = vadd.f32 %v2613, %v2611
  %v2615 = vadd.f32 %v2614, %v2612
  %2616 = vadd.xlane.f32.xlu0 %v2615
  %v2617 = vpop.xlane.xlu0 %2616
  %v2618 = vadd.f32 %v2617, 0.0
  %v2619 = vsub.f32 %v2568, %v2604
  %v2620 = vsub.f32 %v2569, %v2604
  %v2621 = vsub.f32 %v2570, %v2604
  %v2622 = vsub.f32 %v2571, %v2604
  %v2623 = vmul.f32 %v2619, %v2619
  %v2624 = vmul.f32 %v2620, %v2620
  %v2625 = vmul.f32 %v2621, %v2621
  %v2626 = vmul.f32 %v2622, %v2622
  %v2627 = vadd.f32 %v2623, %v2624
  %v2628 = vadd.f32 %v2627, %v2625
  %v2629 = vadd.f32 %v2628, %v2626
  %2630 = vadd.xlane.f32.xlu0 %v2629
  %v2631 = vpop.xlane.xlu0 %2630
  %v2632 = vadd.f32 %v2618, %v2631
  %v2633 = vsub.f32 %v2572, %v2604
  %v2634 = vsub.f32 %v2573, %v2604
  %v2635 = vsub.f32 %v2574, %v2604
  %v2636 = vsub.f32 %v2575, %v2604
  %v2637 = vmul.f32 %v2633, %v2633
  %v2638 = vmul.f32 %v2634, %v2634
  %v2639 = vmul.f32 %v2635, %v2635
  %v2640 = vmul.f32 %v2636, %v2636
  %v2641 = vadd.f32 %v2637, %v2638
  %v2642 = vadd.f32 %v2641, %v2639
  %v2643 = vadd.f32 %v2642, %v2640
  %2644 = vadd.xlane.f32.xlu0 %v2643
  %v2645 = vpop.xlane.xlu0 %2644
  %v2646 = vadd.f32 %v2632, %v2645
  %v2647 = vsub.f32 %v2576, %v2604
  %v2648 = vsub.f32 %v2577, %v2604
  %v2649 = vsub.f32 %v2578, %v2604
  %v2650 = vsub.f32 %v2579, %v2604
  %v2651 = vmul.f32 %v2647, %v2647
  %v2652 = vmul.f32 %v2648, %v2648
  %v2653 = vmul.f32 %v2649, %v2649
  %v2654 = vmul.f32 %v2650, %v2650
  %v2655 = vadd.f32 %v2651, %v2652
  %v2656 = vadd.f32 %v2655, %v2653
  %v2657 = vadd.f32 %v2656, %v2654
  %2658 = vadd.xlane.f32.xlu0 %v2657
  %v2659 = vpop.xlane.xlu0 %2658
  %v2660 = vadd.f32 %v2646, %v2659
  %v2661 = vmul.f32 %v2660, 0.00048828125
  %v2662 = vld [vmem:[%s2] sm:$0xff]
  %v2663 = vadd.f32 %v2661, 1e-05
  %v2664 = vrsqrt.pop %v2663
  %v2665 = vmul.f32 %v2662, %v2664
  %v2666 = vld [vmem:[%s3] sm:$0xff]
  %v2667 = vmul.f32 %v2604, %v2665
  %v2668 = vsub.f32 %v2666, %v2667
  %2670 = vset.pattern.permute.xlu0 0
  %2671 = vperm.xlu0 %2670, %v2665
  %v2672 = vpop.permute.xlu0 %2671
  %v2674 = vmul.f32 %v2564, %v2672
  %v2675 = vmul.f32 %v2565, %v2672
  %v2676 = vmul.f32 %v2566, %v2672
  %v2677 = vmul.f32 %v2567, %v2672
  %2679 = vset.pattern.permute.xlu0 0
  %2680 = vperm.xlu0 %2679, %v2668
  %v2681 = vpop.permute.xlu0 %2680
  %v2683 = vadd.f32 %v2674, %v2681
  %v2684 = vadd.f32 %v2675, %v2681
  %v2685 = vadd.f32 %v2676, %v2681
  %v2686 = vadd.f32 %v2677, %v2681
  %v2687 = vmax.f32 %v2683, 0.0
  %v2688 = vmax.f32 %v2684, 0.0
  %v2689 = vmax.f32 %v2685, 0.0
  %v2690 = vmax.f32 %v2686, 0.0
  %2691 = vst [vmem:[%s4] sm:$0xff] %v2687
  %2692 = vst [vmem:[%s4 + $0x8] sm:$0xff] %v2688
  %2693 = vst [vmem:[%s4 + $0x10] sm:$0xff] %v2689
  %2694 = vst [vmem:[%s4 + $0x18] sm:$0xff] %v2690
  %v2695 = vmul.f32 %v2568, %v2672
  %v2696 = vmul.f32 %v2569, %v2672
  %v2697 = vmul.f32 %v2570, %v2672
  %v2698 = vmul.f32 %v2571, %v2672
  %v2699 = vadd.f32 %v2695, %v2681
  %v2700 = vadd.f32 %v2696, %v2681
  %v2701 = vadd.f32 %v2697, %v2681
  %v2702 = vadd.f32 %v2698, %v2681
  %v2703 = vmax.f32 %v2699, 0.0
  %v2704 = vmax.f32 %v2700, 0.0
  %v2705 = vmax.f32 %v2701, 0.0
  %v2706 = vmax.f32 %v2702, 0.0
  %2707 = vst [vmem:[%s4 + $0x20] sm:$0xff] %v2703
  %2708 = vst [vmem:[%s4 + $0x28] sm:$0xff] %v2704
  %2709 = vst [vmem:[%s4 + $0x30] sm:$0xff] %v2705
  %2710 = vst [vmem:[%s4 + $0x38] sm:$0xff] %v2706
  %v2711 = vmul.f32 %v2572, %v2672
  %v2712 = vmul.f32 %v2573, %v2672
  %v2713 = vmul.f32 %v2574, %v2672
  %v2714 = vmul.f32 %v2575, %v2672
  %v2715 = vadd.f32 %v2711, %v2681
  %v2716 = vadd.f32 %v2712, %v2681
  %v2717 = vadd.f32 %v2713, %v2681
  %v2718 = vadd.f32 %v2714, %v2681
  %v2719 = vmax.f32 %v2715, 0.0
  %v2720 = vmax.f32 %v2716, 0.0
  %v2721 = vmax.f32 %v2717, 0.0
  %v2722 = vmax.f32 %v2718, 0.0
  %2723 = vst [vmem:[%s4 + $0x40] sm:$0xff] %v2719
  %2724 = vst [vmem:[%s4 + $0x48] sm:$0xff] %v2720
  %2725 = vst [vmem:[%s4 + $0x50] sm:$0xff] %v2721
  %2726 = vst [vmem:[%s4 + $0x58] sm:$0xff] %v2722
  %v2727 = vmul.f32 %v2576, %v2672
  %v2728 = vmul.f32 %v2577, %v2672
  %v2729 = vmul.f32 %v2578, %v2672
  %v2730 = vmul.f32 %v2579, %v2672
  %v2731 = vadd.f32 %v2727, %v2681
  %v2732 = vadd.f32 %v2728, %v2681
  %v2733 = vadd.f32 %v2729, %v2681
  %v2734 = vadd.f32 %v2730, %v2681
  %v2735 = vmax.f32 %v2731, 0.0
  %v2736 = vmax.f32 %v2732, 0.0
  %v2737 = vmax.f32 %v2733, 0.0
  %v2738 = vmax.f32 %v2734, 0.0
  %2739 = vst [vmem:[%s4 + $0x60] sm:$0xff] %v2735
  %2740 = vst [vmem:[%s4 + $0x68] sm:$0xff] %v2736
  %2741 = vst [vmem:[%s4 + $0x70] sm:$0xff] %v2737
  %2742 = vst [vmem:[%s4 + $0x78] sm:$0xff] %v2738
  // Predicated region
  $region18: #{deconv2d_block.1} parent=0 // pred_check
    _
  $region19: #{deconv2d_block.1} parent=0 // pred_check_branch
    %2744 = sbr.rel (0) target = $region21
  $region20: #{deconv2d_block.1} parent=0 // pred_region
    _
  $region21: #{deconv2d_block.1} parent=0 // pred_fallthru
    _
  // Predicated region
  $region22: #{deconv2d_block.1} parent=0 // pred_check
    _
  $region23: #{deconv2d_block.1} parent=0 // pred_check_branch
    %2746 = sbr.rel (0) target = $region25
  $region24: #{deconv2d_block.1} parent=0 // pred_region
    _
  $region25: #{deconv2d_block.1} parent=0 // pred_fallthru
    _

</llo_original>
